<compile_context>
chip_gen: v5e
topology: v5e:2x2
jax: 0.10.0
libtpu: 0.0.40
codegen_flags: <defaults>
</compile_context>

<pallas_src>
import functools

import numpy as np
import jax
import jax.numpy as jnp
from jax import lax
from jax.experimental import pallas as pl
from jax.experimental.pallas import tpu as pltpu

_PI = float(np.pi)
_EPS = 1e-5
_COS_E = float(np.cos(_EPS))
_SIN_E = float(np.sin(_EPS))
_COS_HE = float(np.cos(_EPS / 2.0))
_SIN_HE = float(np.sin(_EPS / 2.0))

# Deterministic synthetic "args" for the module __init__.
HPK_SCL = 4.0 * _PI      # args.hpk_scl
SHELL_HAPKE = 3          # args.shell_hapke (only used in the b==None branch)


# ---------------- in-kernel math helpers (pure elementwise) ----------------

def _nan_to(y, rep):
    return jnp.where(jnp.isnan(y), rep, y)


def _recip(x):
    # approximate reciprocal (EUP vrcp) -- only used for tolerant divides
    return pl.reciprocal(x, approx=True)


def _pow15(x):
    # x ** 1.5 with the same NaN behavior for negative bases as torch.pow
    return x * jnp.sqrt(x)


# ------------------------------ Pallas kernel -------------------------------

def _hapke_kernel(cos_i_ref, cos_v_ref, phi_ref, cg_ref, theta_ref,
                  w_ref, b_ref, c_ref, *out_refs, compute_aux):
    if compute_aux:
        brdf_ref, P_ref, Hi_ref, Hv_ref, S_ref, ci_ref, cv_ref = out_refs
    else:
        (brdf_ref,) = out_refs

    cos_i = cos_i_ref[...]          # (8, T) cos(sza)
    cos_v = cos_v_ref[...]          # cos(vza)
    phi = phi_ref[...]              # relative azimuth
    cg = cg_ref[...]                # cos(phase angle)
    th = theta_ref[...]             # roughness
    w = w_ref[...]                  # (3, 8, T)
    b = b_ref[...]
    c = c_ref[...]

    # ---- derived trig (replaces the dropped sin_i / sin_v / cos_p inputs) ----
    sin_i = jnp.sqrt(jnp.maximum(1.0 - cos_i * cos_i, 0.0))   # sin(sza)
    sin_v = jnp.sqrt(jnp.maximum(1.0 - cos_v * cos_v, 0.0))   # sin(vza)
    # same formula (incl. clip) as the wrapper's cphi -> bitwise-consistent
    cos_p = jnp.clip((cg - cos_i * cos_v) / (sin_i * sin_v + 1e-9), -1.0, 1.0)

    # ---- hoisted per-point trig (shared by E1/E2/eta/mu0_eff/mu_eff/S) ----
    # eps-shifted sin/cos via angle-addition identities (exact, VALU only).
    sin_ie = sin_i * _COS_E + cos_i * _SIN_E          # sin(sza + eps)
    cos_ie = cos_i * _COS_E - sin_i * _SIN_E          # cos(sza + eps)
    sin_ve = sin_v * _COS_E + cos_v * _SIN_E
    cos_ve = cos_v * _COS_E - sin_v * _SIN_E
    # exact divisions: these feed exp() arguments in E1/E2 (error-amplifying)
    cot_ie = cos_ie / sin_ie                          # 1/tan(sza+eps)
    cot_ve = cos_ve / sin_ve

    sin_t = jnp.sin(th)
    cos_t = jnp.cos(th)
    sin_te = sin_t * _COS_E + cos_t * _SIN_E          # sin(theta+eps)
    cos_te = cos_t * _COS_E - sin_t * _SIN_E
    tan_te = sin_te / cos_te                          # tan(theta+eps)  (chi/eta)
    cot_te = cos_te / sin_te                          # 1/tan(theta+eps) (E1/E2)
    # NOTE: the reference's mu0_eff/mu_eff use tan(theta) WITHOUT +eps; kept.
    tan_t = sin_t / cos_t

    chi_t = _nan_to(lax.rsqrt(1.0 + _PI * tan_te * tan_te), 0.0)       # chi(theta)

    cot2_te = cot_te * cot_te
    E1_i = _nan_to(jnp.exp(-(2.0 / _PI) * cot_te * cot_ie), 0.0)       # E1(sza,th)
    E1_v = _nan_to(jnp.exp(-(2.0 / _PI) * cot_te * cot_ve), 0.0)       # E1(vza,th)
    E2_i = _nan_to(jnp.exp(-(1.0 / _PI) * cot2_te * (cot_ie * cot_ie)), 0.0)
    E2_v = _nan_to(jnp.exp(-(1.0 / _PI) * cot2_te * (cot_ve * cot_ve)), 0.0)

    sin_hp2 = (1.0 - cos_p) * 0.5                     # sin(phi/2)^2

    # ---- mu0_eff / mu_eff -- one shared denominator, selected BEFORE recip ----
    le = cos_i >= cos_v              # sza <= vza  (arccos is monotone decreasing)
    phi_pi = phi * (1.0 / _PI)
    inv_d = 1.0 / jnp.where(le,
                            2.0 - E1_v - phi_pi * E1_i,
                            2.0 - E1_i - phi_pi * E1_v)   # exact: can be near 0

    y_ci = jnp.where(le,
                     cos_p * E2_v + sin_hp2 * E2_i,
                     E2_i - sin_hp2 * E2_v) * inv_d
    mu0 = _nan_to(chi_t * (cos_i + sin_i * tan_t * y_ci), cos_i)       # ci (effective)

    y_cv = jnp.where(le,
                     E2_v - sin_hp2 * E2_i,
                     cos_p * E2_i + sin_hp2 * E2_v) * inv_d
    mue = _nan_to(chi_t * (cos_v + sin_v * tan_t * y_cv), cos_v)       # cv (effective)

    if compute_aux:
        ci_ref[...] = mu0            # store early: shortens live ranges (v5e vst)
        cv_ref[...] = mue

    # ---- shadowing function S (uses raw cosines + mue) ----
    eta_i = _nan_to(chi_t * (cos_i + sin_i * tan_te * E2_i * _recip(2.0 - E1_i)), 0.0)
    eta_v = _nan_to(chi_t * (cos_v + sin_v * tan_te * E2_v * _recip(2.0 - E1_v)), 0.0)

    # f(phi) = exp(-2*tan((phi+eps)/2)); half-angle from cos(phi), then eps shift.
    sin_hp = jnp.sqrt(jnp.maximum(sin_hp2, 0.0))
    cos_hp = jnp.sqrt(jnp.maximum((1.0 + cos_p) * 0.5, 0.0))
    sin_hpe = sin_hp * _COS_HE + cos_hp * _SIN_HE                      # sin((phi+eps)/2)
    cos_hpe = cos_hp * _COS_HE - sin_hp * _SIN_HE
    f_phi = _nan_to(jnp.exp(-2.0 * sin_hpe / cos_hpe), 0.0)            # exact (exp arg)

    inv_eta = _recip(eta_i * eta_v)                   # one recip shared below
    temp = mue * cos_i * chi_t * inv_eta              # mue/etae * ci/etai * chi
    ratio_sel = jnp.where(le, cos_i * eta_v, cos_v * eta_i) * inv_eta  # ci/etai | cv/etae
    Sh = _nan_to(temp * _recip(1.0 - f_phi + f_phi * chi_t * ratio_sel), 0.0)

    if compute_aux:
        S_ref[...] = Sh

    # ---- per-channel path (scalar rows broadcast over leading channel axis) ----
    cg_b = cg[None]                   # (1, 8, T)
    b2 = b * b
    bx = b * cg_b
    omb2 = 1.0 - b2
    P = (c * omb2 * _recip(_pow15(1.0 - 2.0 * bx + b2) + 1e-6)
         + (1.0 - c) * omb2 * _recip(_pow15(1.0 + 2.0 * bx + b2) + 1e-6))
    P = _nan_to(P, 0.0)
    if compute_aux:
        P_ref[...] = P

    # HF: the (1+x)/x and log only depend on the per-point effective cosine ->
    # compute once at (8, T) and broadcast to channels.  Exact divide in the log.
    lg_i = jnp.log(jnp.abs((1.0 + mu0) / mu0))
    lg_v = jnp.log(jnp.abs((1.0 + mue) / mue))

    gamma = jnp.sqrt(1.0 - w)
    ro = (1.0 - gamma) * _recip(1.0 + gamma)

    xi = mu0[None]
    Hi = _nan_to(_recip(1.0 - w * xi * (ro + (1.0 - 2.0 * ro * xi) * 0.5 * lg_i[None])),
                 1.0)
    xv = mue[None]
    Hv = _nan_to(_recip(1.0 - w * xv * (ro + (1.0 - 2.0 * ro * xv) * 0.5 * lg_v[None])),
                 1.0)
    if compute_aux:
        Hi_ref[...] = Hi
        Hv_ref[...] = Hv

    # ---- final combine (B == 1 on this path; one folded reciprocal for t1) ----
    t1 = mu0 * _recip((mu0 + mue) * cos_i)            # ci/(ci+cv)/cos(sza)
    brdf_ref[...] = w * (1.0 / HPK_SCL) * t1[None] * (P + Hi * Hv - 1.0) * Sh[None]


# ------------------------------ JAX wrapper ---------------------------------

def hapke_forward(pts2l, pts2c, normal, w, b, c, theta, *,
                  tile=2048, compute_aux=True, channel_major=False):
    """pts2l: (N,1,3), pts2c/normal: (N,3), theta: (N,).

    w/b/c: (N,3)  (or (3,N) if channel_major=True -- avoids wrapper transposes).
    compute_aux=False returns only the BRDF (halves the kernel's output bytes).
    """
    N = pts2c.shape[0]
    l = pts2l[:, 0, :]

    def _unit(v):
        return v / jnp.sqrt(jnp.sum(v * v, axis=-1, keepdims=True))

    ln, vn, nn = _unit(l), _unit(pts2c), _unit(normal)
    # calc_angles glue (arccos stays outside the kernel); the dot products give
    # cos(sza)/cos(vza)/cos(g) directly -- sin/cos(phi) are re-derived in-kernel.
    ci0 = jnp.clip(jnp.sum(ln * nn, -1), -1.0, 1.0)   # cos(sza)
    cv0 = jnp.clip(jnp.sum(vn * nn, -1), -1.0, 1.0)   # cos(vza)
    cg = jnp.clip(jnp.sum(ln * vn, -1), -1.0, 1.0)    # cos(phase angle)
    si = jnp.sqrt(jnp.maximum(1.0 - ci0 * ci0, 0.0))
    sv = jnp.sqrt(jnp.maximum(1.0 - cv0 * cv0, 0.0))
    cphi = jnp.clip((cg - ci0 * cv0) / (si * sv + 1e-9), -1.0, 1.0)
    phi = jnp.arccos(cphi)                            # relative azimuth

    # Sublane-dense layout: point p = row*M + lane, 8 sublane rows.
    rows = 8
    cols = -(-N // rows)
    cols128 = max(128, -(-cols // 128) * 128)
    # big lane tiles amortize per-step overhead; cap to the data we have
    tile = max(128, (min(int(tile), cols128) // 128) * 128)
    if cols128 <= tile and cols128 >= 256:
        # one tile would cover everything: split so the "parallel" grid axis
        # has >= 2 steps (v7x: work for both TensorCores).
        tile = -(-(cols128 // 2) // 128) * 128
    M = -(-cols // tile) * tile
    Np = rows * M
    pad = Np - N

    def prep1(x):   # (N,)   -> (8, M)
        return jnp.pad(x.astype(jnp.float32), (0, pad)).reshape(rows, M)

    if channel_major:
        def prep3(x):   # (3, N) -> (3, 8, M)   (no transpose needed)
            return jnp.pad(x.astype(jnp.float32), ((0, 0), (0, pad))).reshape(3, rows, M)
    else:
        def prep3(x):   # (N, 3) -> (3, 8, M)
            return jnp.pad(x.astype(jnp.float32), ((0, pad), (0, 0))).T.reshape(3, rows, M)

    ins = (prep1(ci0), prep1(cv0), prep1(phi), prep1(cg), prep1(theta),
           prep3(w), prep3(b), prep3(c))

    s1 = pl.BlockSpec((rows, tile), lambda i: (0, i))
    s3 = pl.BlockSpec((3, rows, tile), lambda i: (0, 0, i))

    o3 = jax.ShapeDtypeStruct((3, rows, M), jnp.float32)
    o1 = jax.ShapeDtypeStruct((rows, M), jnp.float32)
    if compute_aux:
        out_shapes = (o3, o3, o3, o3, o1, o1, o1)   # brdf, P, Hi, Hv, S, ci, cv
        out_specs = (s3, s3, s3, s3, s1, s1, s1)
    else:
        out_shapes = (o3,)                          # brdf only
        out_specs = (s3,)

    kernel = functools.partial(_hapke_kernel, compute_aux=compute_aux)

    outs = pl.pallas_call(
        kernel,
        out_shape=out_shapes,
        grid_spec=pltpu.PrefetchScalarGridSpec(
            num_scalar_prefetch=0,
            grid=(M // tile,),
            in_specs=[s1] * 5 + [s3] * 3,
            out_specs=out_specs,
        ),
        compiler_params=pltpu.CompilerParams(
            dimension_semantics=("parallel",),        # v7x: shard tiles over 2 TCs
            vmem_limit_bytes=32 * 1024 * 1024),       # headroom for big tiles
    )(*ins)

    if channel_major:
        def back3(x):   # (3, 8, M) -> (3, N)   (slice only, no transpose)
            return x.reshape(3, Np)[:, :N]
    else:
        def back3(x):   # (3, 8, M) -> (N, 3)
            return x.reshape(3, Np).T[:N]

    def back1(x):   # (8, M) -> (N,)
        return x.reshape(Np)[:N]

    if not compute_aux:
        return back3(outs[0])

    brdf, P, Hi, Hv, Sh, ci_eff, cv_eff = outs

    # B0/h == None path: B is identically 1 -> built here, not in the kernel.
    B = jnp.ones((N, 1), jnp.float32)
    return (back3(brdf),            # (N, 3)  [or (3, N) if channel_major]
            back3(P),               # (N, 3)
            B,                      # (N, 1)
            back3(Hi),              # (N, 3)
            back3(Hv),              # (N, 3)
            back1(Sh)[:, None],     # (N, 1)
            back1(ci_eff),          # (N,)
            back1(cv_eff))          # (N,)


# --------------------------------- driver -----------------------------------

if __name__ == "__main__":
    key = jax.random.PRNGKey(0)
    N = 200
    k = jax.random.split(key, 7)

    def _dirs(kk):
        v = jax.random.normal(kk, (N, 3), dtype=jnp.float32)
        v = v.at[:, 2].set(jnp.abs(v[:, 2]) + 0.3)   # mostly upper hemisphere
        return v / jnp.sqrt(jnp.sum(v * v, -1, keepdims=True))

    normal = _dirs(k[0])                      # (N, 3)
    pts2l = _dirs(k[1])[:, None, :]           # (N, 1, 3)  L = 1
    pts2c = _dirs(k[2])                       # (N, 3)
    w = jax.random.uniform(k[3], (N, 3), minval=0.05, maxval=0.95, dtype=jnp.float32)
    b = jax.random.uniform(k[4], (N, 3), minval=0.05, maxval=0.80, dtype=jnp.float32)
    c = jax.random.uniform(k[5], (N, 3), minval=0.10, maxval=0.90, dtype=jnp.float32)
    theta = jax.random.uniform(k[6], (N,), minval=0.05, maxval=0.50, dtype=jnp.float32)

    # full module semantics: all eight outputs
    outs = hapke_forward(pts2l, pts2c, normal, w, b, c, theta)
    jax.tree_util.tree_map(jax.block_until_ready, outs)

    # BRDF-only path (gated aux outputs) -- exercises the reduced-traffic kernel
    brdf_only = hapke_forward(pts2l, pts2c, normal, w, b, c, theta,
                              compute_aux=False)
    jax.block_until_ready(brdf_only)

    print("KERNEL_OK")
</pallas_src>

<mosaic_0001>
module attributes {stable_mosaic.version = 11 : i64} {
  func.func @_hapke_kernel(%arg0: i32, %arg1: memref<8x128xf32, #tpu.memory_space<vmem>>, %arg2: memref<8x128xf32, #tpu.memory_space<vmem>>, %arg3: memref<8x128xf32, #tpu.memory_space<vmem>>, %arg4: memref<8x128xf32, #tpu.memory_space<vmem>>, %arg5: memref<8x128xf32, #tpu.memory_space<vmem>>, %arg6: memref<3x8x128xf32, #tpu.memory_space<vmem>>, %arg7: memref<3x8x128xf32, #tpu.memory_space<vmem>>, %arg8: memref<3x8x128xf32, #tpu.memory_space<vmem>>, %arg9: memref<3x8x128xf32, #tpu.memory_space<vmem>>, %arg10: memref<3x8x128xf32, #tpu.memory_space<vmem>>, %arg11: memref<3x8x128xf32, #tpu.memory_space<vmem>>, %arg12: memref<3x8x128xf32, #tpu.memory_space<vmem>>, %arg13: memref<8x128xf32, #tpu.memory_space<vmem>>, %arg14: memref<8x128xf32, #tpu.memory_space<vmem>>, %arg15: memref<8x128xf32, #tpu.memory_space<vmem>>) attributes {dimension_semantics = [#tpu.dimension_semantics<parallel>], iteration_bounds = array<i64: 1>, scalar_prefetch = 0 : i64, scratch_operands = 0 : i64, tpu.core_type = #tpu.core_type<tc>, window_params = [{transform_indices = @transform_0, window_bounds = array<i64: 8, 128>}, {transform_indices = @transform_1, window_bounds = array<i64: 8, 128>}, {transform_indices = @transform_2, window_bounds = array<i64: 8, 128>}, {transform_indices = @transform_3, window_bounds = array<i64: 8, 128>}, {transform_indices = @transform_4, window_bounds = array<i64: 8, 128>}, {transform_indices = @transform_5, window_bounds = array<i64: 3, 8, 128>}, {transform_indices = @transform_6, window_bounds = array<i64: 3, 8, 128>}, {transform_indices = @transform_7, window_bounds = array<i64: 3, 8, 128>}, {transform_indices = @transform_8, window_bounds = array<i64: 3, 8, 128>}, {transform_indices = @transform_9, window_bounds = array<i64: 3, 8, 128>}, {transform_indices = @transform_10, window_bounds = array<i64: 3, 8, 128>}, {transform_indices = @transform_11, window_bounds = array<i64: 3, 8, 128>}, {transform_indices = @transform_12, window_bounds = array<i64: 8, 128>}, {transform_indices = @transform_13, window_bounds = array<i64: 8, 128>}, {transform_indices = @transform_14, window_bounds = array<i64: 8, 128>}]} {
    %c0 = arith.constant 0 : index
    %c0_0 = arith.constant 0 : index
    %0 = vector.load %arg1[%c0, %c0_0] : memref<8x128xf32, #tpu.memory_space<vmem>>, vector<8x128xf32>
    %c0_1 = arith.constant 0 : index
    %c0_2 = arith.constant 0 : index
    %1 = vector.load %arg2[%c0_1, %c0_2] : memref<8x128xf32, #tpu.memory_space<vmem>>, vector<8x128xf32>
    %c0_3 = arith.constant 0 : index
    %c0_4 = arith.constant 0 : index
    %2 = vector.load %arg3[%c0_3, %c0_4] : memref<8x128xf32, #tpu.memory_space<vmem>>, vector<8x128xf32>
    %c0_5 = arith.constant 0 : index
    %c0_6 = arith.constant 0 : index
    %3 = vector.load %arg4[%c0_5, %c0_6] : memref<8x128xf32, #tpu.memory_space<vmem>>, vector<8x128xf32>
    %c0_7 = arith.constant 0 : index
    %c0_8 = arith.constant 0 : index
    %4 = vector.load %arg5[%c0_7, %c0_8] : memref<8x128xf32, #tpu.memory_space<vmem>>, vector<8x128xf32>
    %c0_9 = arith.constant 0 : index
    %c0_10 = arith.constant 0 : index
    %c0_11 = arith.constant 0 : index
    %5 = vector.load %arg6[%c0_9, %c0_10, %c0_11] : memref<3x8x128xf32, #tpu.memory_space<vmem>>, vector<3x8x128xf32>
    %c0_12 = arith.constant 0 : index
    %c0_13 = arith.constant 0 : index
    %c0_14 = arith.constant 0 : index
    %6 = vector.load %arg7[%c0_12, %c0_13, %c0_14] : memref<3x8x128xf32, #tpu.memory_space<vmem>>, vector<3x8x128xf32>
    %c0_15 = arith.constant 0 : index
    %c0_16 = arith.constant 0 : index
    %c0_17 = arith.constant 0 : index
    %7 = vector.load %arg8[%c0_15, %c0_16, %c0_17] : memref<3x8x128xf32, #tpu.memory_space<vmem>>, vector<3x8x128xf32>
    %8 = arith.mulf %0, %0 : vector<8x128xf32>
    %cst = arith.constant 1.000000e+00 : f32
    %9 = vector.broadcast %cst : f32 to vector<8x128xf32>
    %10 = arith.subf %9, %8 : vector<8x128xf32>
    %cst_18 = arith.constant 0.000000e+00 : f32
    %11 = vector.broadcast %cst_18 : f32 to vector<8x128xf32>
    %12 = arith.maximumf %10, %11 : vector<8x128xf32>
    %13 = math.sqrt %12 : vector<8x128xf32>
    %14 = arith.mulf %1, %1 : vector<8x128xf32>
    %cst_19 = arith.constant 1.000000e+00 : f32
    %15 = vector.broadcast %cst_19 : f32 to vector<8x128xf32>
    %16 = arith.subf %15, %14 : vector<8x128xf32>
    %cst_20 = arith.constant 0.000000e+00 : f32
    %17 = vector.broadcast %cst_20 : f32 to vector<8x128xf32>
    %18 = arith.maximumf %16, %17 : vector<8x128xf32>
    %19 = math.sqrt %18 : vector<8x128xf32>
    %20 = arith.mulf %0, %1 : vector<8x128xf32>
    %21 = arith.subf %3, %20 : vector<8x128xf32>
    %22 = arith.mulf %13, %19 : vector<8x128xf32>
    %cst_21 = arith.constant 9.99999971E-10 : f32
    %23 = vector.broadcast %cst_21 : f32 to vector<8x128xf32>
    %24 = arith.addf %22, %23 : vector<8x128xf32>
    %25 = arith.divf %21, %24 : vector<8x128xf32>
    %cst_22 = arith.constant -1.000000e+00 : f32
    %cst_23 = arith.constant 1.000000e+00 : f32
    %26 = vector.broadcast %cst_22 : f32 to vector<8x128xf32>
    %27 = arith.maximumf %26, %25 : vector<8x128xf32>
    %28 = vector.broadcast %cst_23 : f32 to vector<8x128xf32>
    %29 = arith.minimumf %28, %27 : vector<8x128xf32>
    %cst_24 = arith.constant 1.000000e+00 : f32
    %30 = vector.broadcast %cst_24 : f32 to vector<8x128xf32>
    %31 = arith.mulf %13, %30 : vector<8x128xf32>
    %cst_25 = arith.constant 9.99999974E-6 : f32
    %32 = vector.broadcast %cst_25 : f32 to vector<8x128xf32>
    %33 = arith.mulf %0, %32 : vector<8x128xf32>
    %34 = arith.addf %31, %33 : vector<8x128xf32>
    %cst_26 = arith.constant 1.000000e+00 : f32
    %35 = vector.broadcast %cst_26 : f32 to vector<8x128xf32>
    %36 = arith.mulf %0, %35 : vector<8x128xf32>
    %cst_27 = arith.constant 9.99999974E-6 : f32
    %37 = vector.broadcast %cst_27 : f32 to vector<8x128xf32>
    %38 = arith.mulf %13, %37 : vector<8x128xf32>
    %39 = arith.subf %36, %38 : vector<8x128xf32>
    %cst_28 = arith.constant 1.000000e+00 : f32
    %40 = vector.broadcast %cst_28 : f32 to vector<8x128xf32>
    %41 = arith.mulf %19, %40 : vector<8x128xf32>
    %cst_29 = arith.constant 9.99999974E-6 : f32
    %42 = vector.broadcast %cst_29 : f32 to vector<8x128xf32>
    %43 = arith.mulf %1, %42 : vector<8x128xf32>
    %44 = arith.addf %41, %43 : vector<8x128xf32>
    %cst_30 = arith.constant 1.000000e+00 : f32
    %45 = vector.broadcast %cst_30 : f32 to vector<8x128xf32>
    %46 = arith.mulf %1, %45 : vector<8x128xf32>
    %cst_31 = arith.constant 9.99999974E-6 : f32
    %47 = vector.broadcast %cst_31 : f32 to vector<8x128xf32>
    %48 = arith.mulf %19, %47 : vector<8x128xf32>
    %49 = arith.subf %46, %48 : vector<8x128xf32>
    %50 = arith.divf %39, %34 : vector<8x128xf32>
    %51 = arith.divf %49, %44 : vector<8x128xf32>
    %52 = math.sin %4 : vector<8x128xf32>
    %53 = math.cos %4 : vector<8x128xf32>
    %cst_32 = arith.constant 1.000000e+00 : f32
    %54 = vector.broadcast %cst_32 : f32 to vector<8x128xf32>
    %55 = arith.mulf %52, %54 : vector<8x128xf32>
    %cst_33 = arith.constant 9.99999974E-6 : f32
    %56 = vector.broadcast %cst_33 : f32 to vector<8x128xf32>
    %57 = arith.mulf %53, %56 : vector<8x128xf32>
    %58 = arith.addf %55, %57 : vector<8x128xf32>
    %cst_34 = arith.constant 1.000000e+00 : f32
    %59 = vector.broadcast %cst_34 : f32 to vector<8x128xf32>
    %60 = arith.mulf %53, %59 : vector<8x128xf32>
    %cst_35 = arith.constant 9.99999974E-6 : f32
    %61 = vector.broadcast %cst_35 : f32 to vector<8x128xf32>
    %62 = arith.mulf %52, %61 : vector<8x128xf32>
    %63 = arith.subf %60, %62 : vector<8x128xf32>
    %64 = arith.divf %58, %63 : vector<8x128xf32>
    %65 = arith.divf %63, %58 : vector<8x128xf32>
    %66 = arith.divf %52, %53 : vector<8x128xf32>
    %cst_36 = arith.constant 3.14159274 : f32
    %67 = vector.broadcast %cst_36 : f32 to vector<8x128xf32>
    %68 = arith.mulf %67, %64 : vector<8x128xf32>
    %69 = arith.mulf %68, %64 : vector<8x128xf32>
    %cst_37 = arith.constant 1.000000e+00 : f32
    %70 = vector.broadcast %cst_37 : f32 to vector<8x128xf32>
    %71 = arith.addf %70, %69 : vector<8x128xf32>
    %72 = math.rsqrt %71 : vector<8x128xf32>
    %73 = arith.cmpf one, %72, %72 : vector<8x128xf32>
    %cst_38 = arith.constant 0.000000e+00 : f32
    %74 = vector.broadcast %cst_38 : f32 to vector<8x128xf32>
    %75 = arith.select %73, %74, %72 : vector<8x128xi1>, vector<8x128xf32>
    %76 = arith.mulf %65, %65 : vector<8x128xf32>
    %cst_39 = arith.constant -0.636619746 : f32
    %77 = vector.broadcast %cst_39 : f32 to vector<8x128xf32>
    %78 = arith.mulf %77, %65 : vector<8x128xf32>
    %79 = arith.mulf %78, %50 : vector<8x128xf32>
    %80 = math.exp %79 : vector<8x128xf32>
    %81 = arith.cmpf one, %80, %80 : vector<8x128xf32>
    %cst_40 = arith.constant 0.000000e+00 : f32
    %82 = vector.broadcast %cst_40 : f32 to vector<8x128xf32>
    %83 = arith.select %81, %82, %80 : vector<8x128xi1>, vector<8x128xf32>
    %cst_41 = arith.constant -0.636619746 : f32
    %84 = vector.broadcast %cst_41 : f32 to vector<8x128xf32>
    %85 = arith.mulf %84, %65 : vector<8x128xf32>
    %86 = arith.mulf %85, %51 : vector<8x128xf32>
    %87 = math.exp %86 : vector<8x128xf32>
    %88 = arith.cmpf one, %87, %87 : vector<8x128xf32>
    %cst_42 = arith.constant 0.000000e+00 : f32
    %89 = vector.broadcast %cst_42 : f32 to vector<8x128xf32>
    %90 = arith.select %88, %89, %87 : vector<8x128xi1>, vector<8x128xf32>
    %cst_43 = arith.constant -0.318309873 : f32
    %91 = vector.broadcast %cst_43 : f32 to vector<8x128xf32>
    %92 = arith.mulf %91, %76 : vector<8x128xf32>
    %93 = arith.mulf %50, %50 : vector<8x128xf32>
    %94 = arith.mulf %92, %93 : vector<8x128xf32>
    %95 = math.exp %94 : vector<8x128xf32>
    %96 = arith.cmpf one, %95, %95 : vector<8x128xf32>
    %cst_44 = arith.constant 0.000000e+00 : f32
    %97 = vector.broadcast %cst_44 : f32 to vector<8x128xf32>
    %98 = arith.select %96, %97, %95 : vector<8x128xi1>, vector<8x128xf32>
    %cst_45 = arith.constant -0.318309873 : f32
    %99 = vector.broadcast %cst_45 : f32 to vector<8x128xf32>
    %100 = arith.mulf %99, %76 : vector<8x128xf32>
    %101 = arith.mulf %51, %51 : vector<8x128xf32>
    %102 = arith.mulf %100, %101 : vector<8x128xf32>
    %103 = math.exp %102 : vector<8x128xf32>
    %104 = arith.cmpf one, %103, %103 : vector<8x128xf32>
    %cst_46 = arith.constant 0.000000e+00 : f32
    %105 = vector.broadcast %cst_46 : f32 to vector<8x128xf32>
    %106 = arith.select %104, %105, %103 : vector<8x128xi1>, vector<8x128xf32>
    %cst_47 = arith.constant 1.000000e+00 : f32
    %107 = vector.broadcast %cst_47 : f32 to vector<8x128xf32>
    %108 = arith.subf %107, %29 : vector<8x128xf32>
    %cst_48 = arith.constant 5.000000e-01 : f32
    %109 = vector.broadcast %cst_48 : f32 to vector<8x128xf32>
    %110 = arith.mulf %108, %109 : vector<8x128xf32>
    %111 = arith.cmpf oge, %0, %1 : vector<8x128xf32>
    %cst_49 = arith.constant 0.318309873 : f32
    %112 = vector.broadcast %cst_49 : f32 to vector<8x128xf32>
    %113 = arith.mulf %2, %112 : vector<8x128xf32>
    %cst_50 = arith.constant 2.000000e+00 : f32
    %114 = vector.broadcast %cst_50 : f32 to vector<8x128xf32>
    %115 = arith.subf %114, %90 : vector<8x128xf32>
    %116 = arith.mulf %113, %83 : vector<8x128xf32>
    %117 = arith.subf %115, %116 : vector<8x128xf32>
    %cst_51 = arith.constant 2.000000e+00 : f32
    %118 = vector.broadcast %cst_51 : f32 to vector<8x128xf32>
    %119 = arith.subf %118, %83 : vector<8x128xf32>
    %120 = arith.mulf %113, %90 : vector<8x128xf32>
    %121 = arith.subf %119, %120 : vector<8x128xf32>
    %122 = arith.select %111, %117, %121 : vector<8x128xi1>, vector<8x128xf32>
    %cst_52 = arith.constant 1.000000e+00 : f32
    %123 = vector.broadcast %cst_52 : f32 to vector<8x128xf32>
    %124 = arith.divf %123, %122 : vector<8x128xf32>
    %125 = arith.mulf %29, %106 : vector<8x128xf32>
    %126 = arith.mulf %110, %98 : vector<8x128xf32>
    %127 = arith.addf %125, %126 : vector<8x128xf32>
    %128 = arith.mulf %110, %106 : vector<8x128xf32>
    %129 = arith.subf %98, %128 : vector<8x128xf32>
    %130 = arith.select %111, %127, %129 : vector<8x128xi1>, vector<8x128xf32>
    %131 = arith.mulf %130, %124 : vector<8x128xf32>
    %132 = arith.mulf %13, %66 : vector<8x128xf32>
    %133 = arith.mulf %132, %131 : vector<8x128xf32>
    %134 = arith.addf %0, %133 : vector<8x128xf32>
    %135 = arith.mulf %75, %134 : vector<8x128xf32>
    %136 = arith.cmpf one, %135, %135 : vector<8x128xf32>
    %137 = arith.select %136, %0, %135 : vector<8x128xi1>, vector<8x128xf32>
    %138 = arith.mulf %110, %98 : vector<8x128xf32>
    %139 = arith.subf %106, %138 : vector<8x128xf32>
    %140 = arith.mulf %29, %98 : vector<8x128xf32>
    %141 = arith.mulf %110, %106 : vector<8x128xf32>
    %142 = arith.addf %140, %141 : vector<8x128xf32>
    %143 = arith.select %111, %139, %142 : vector<8x128xi1>, vector<8x128xf32>
    %144 = arith.mulf %143, %124 : vector<8x128xf32>
    %145 = arith.mulf %19, %66 : vector<8x128xf32>
    %146 = arith.mulf %145, %144 : vector<8x128xf32>
    %147 = arith.addf %1, %146 : vector<8x128xf32>
    %148 = arith.mulf %75, %147 : vector<8x128xf32>
    %149 = arith.cmpf one, %148, %148 : vector<8x128xf32>
    %150 = arith.select %149, %1, %148 : vector<8x128xi1>, vector<8x128xf32>
    %c0_53 = arith.constant 0 : index
    %c0_54 = arith.constant 0 : index
    %151 = vector.load %arg14[%c0_53, %c0_54] : memref<8x128xf32, #tpu.memory_space<vmem>>, vector<8x128xf32>
    tpu.vector_store %arg14[%c0_53, %c0_54], %137 {strides = array<i32>} : memref<8x128xf32, #tpu.memory_space<vmem>>, vector<8x128xf32>,
    %c0_55 = arith.constant 0 : index
    %c0_56 = arith.constant 0 : index
    %152 = vector.load %arg15[%c0_55, %c0_56] : memref<8x128xf32, #tpu.memory_space<vmem>>, vector<8x128xf32>
    tpu.vector_store %arg15[%c0_55, %c0_56], %150 {strides = array<i32>} : memref<8x128xf32, #tpu.memory_space<vmem>>, vector<8x128xf32>,
    %153 = arith.mulf %13, %64 : vector<8x128xf32>
    %154 = arith.mulf %153, %98 : vector<8x128xf32>
    %cst_57 = arith.constant 2.000000e+00 : f32
    %155 = vector.broadcast %cst_57 : f32 to vector<8x128xf32>
    %156 = arith.subf %155, %83 : vector<8x128xf32>
    %157 = tpu.reciprocal %156 {approx = true} : vector<8x128xf32> -> vector<8x128xf32>
    %158 = arith.mulf %154, %157 : vector<8x128xf32>
    %159 = arith.addf %0, %158 : vector<8x128xf32>
    %160 = arith.mulf %75, %159 : vector<8x128xf32>
    %161 = arith.cmpf one, %160, %160 : vector<8x128xf32>
    %cst_58 = arith.constant 0.000000e+00 : f32
    %162 = vector.broadcast %cst_58 : f32 to vector<8x128xf32>
    %163 = arith.select %161, %162, %160 : vector<8x128xi1>, vector<8x128xf32>
    %164 = arith.mulf %19, %64 : vector<8x128xf32>
    %165 = arith.mulf %164, %106 : vector<8x128xf32>
    %cst_59 = arith.constant 2.000000e+00 : f32
    %166 = vector.broadcast %cst_59 : f32 to vector<8x128xf32>
    %167 = arith.subf %166, %90 : vector<8x128xf32>
    %168 = tpu.reciprocal %167 {approx = true} : vector<8x128xf32> -> vector<8x128xf32>
    %169 = arith.mulf %165, %168 : vector<8x128xf32>
    %170 = arith.addf %1, %169 : vector<8x128xf32>
    %171 = arith.mulf %75, %170 : vector<8x128xf32>
    %172 = arith.cmpf one, %171, %171 : vector<8x128xf32>
    %cst_60 = arith.constant 0.000000e+00 : f32
    %173 = vector.broadcast %cst_60 : f32 to vector<8x128xf32>
    %174 = arith.select %172, %173, %171 : vector<8x128xi1>, vector<8x128xf32>
    %cst_61 = arith.constant 0.000000e+00 : f32
    %175 = vector.broadcast %cst_61 : f32 to vector<8x128xf32>
    %176 = arith.maximumf %110, %175 : vector<8x128xf32>
    %177 = math.sqrt %176 : vector<8x128xf32>
    %cst_62 = arith.constant 1.000000e+00 : f32
    %178 = vector.broadcast %cst_62 : f32 to vector<8x128xf32>
    %179 = arith.addf %178, %29 : vector<8x128xf32>
    %cst_63 = arith.constant 5.000000e-01 : f32
    %180 = vector.broadcast %cst_63 : f32 to vector<8x128xf32>
    %181 = arith.mulf %179, %180 : vector<8x128xf32>
    %cst_64 = arith.constant 0.000000e+00 : f32
    %182 = vector.broadcast %cst_64 : f32 to vector<8x128xf32>
    %183 = arith.maximumf %181, %182 : vector<8x128xf32>
    %184 = math.sqrt %183 : vector<8x128xf32>
    %cst_65 = arith.constant 1.000000e+00 : f32
    %185 = vector.broadcast %cst_65 : f32 to vector<8x128xf32>
    %186 = arith.mulf %177, %185 : vector<8x128xf32>
    %cst_66 = arith.constant 5.000000e-06 : f32
    %187 = vector.broadcast %cst_66 : f32 to vector<8x128xf32>
    %188 = arith.mulf %184, %187 : vector<8x128xf32>
    %189 = arith.addf %186, %188 : vector<8x128xf32>
    %cst_67 = arith.constant 1.000000e+00 : f32
    %190 = vector.broadcast %cst_67 : f32 to vector<8x128xf32>
    %191 = arith.mulf %184, %190 : vector<8x128xf32>
    %cst_68 = arith.constant 5.000000e-06 : f32
    %192 = vector.broadcast %cst_68 : f32 to vector<8x128xf32>
    %193 = arith.mulf %177, %192 : vector<8x128xf32>
    %194 = arith.subf %191, %193 : vector<8x128xf32>
    %cst_69 = arith.constant -2.000000e+00 : f32
    %195 = vector.broadcast %cst_69 : f32 to vector<8x128xf32>
    %196 = arith.mulf %195, %189 : vector<8x128xf32>
    %197 = arith.divf %196, %194 : vector<8x128xf32>
    %198 = math.exp %197 : vector<8x128xf32>
    %199 = arith.cmpf one, %198, %198 : vector<8x128xf32>
    %cst_70 = arith.constant 0.000000e+00 : f32
    %200 = vector.broadcast %cst_70 : f32 to vector<8x128xf32>
    %201 = arith.select %199, %200, %198 : vector<8x128xi1>, vector<8x128xf32>
    %202 = arith.mulf %163, %174 : vector<8x128xf32>
    %203 = tpu.reciprocal %202 {approx = true} : vector<8x128xf32> -> vector<8x128xf32>
    %204 = arith.mulf %150, %0 : vector<8x128xf32>
    %205 = arith.mulf %204, %75 : vector<8x128xf32>
    %206 = arith.mulf %205, %203 : vector<8x128xf32>
    %207 = arith.mulf %0, %174 : vector<8x128xf32>
    %208 = arith.mulf %1, %163 : vector<8x128xf32>
    %209 = arith.select %111, %207, %208 : vector<8x128xi1>, vector<8x128xf32>
    %210 = arith.mulf %209, %203 : vector<8x128xf32>
    %cst_71 = arith.constant 1.000000e+00 : f32
    %211 = vector.broadcast %cst_71 : f32 to vector<8x128xf32>
    %212 = arith.subf %211, %201 : vector<8x128xf32>
    %213 = arith.mulf %201, %75 : vector<8x128xf32>
    %214 = arith.mulf %213, %210 : vector<8x128xf32>
    %215 = arith.addf %212, %214 : vector<8x128xf32>
    %216 = tpu.reciprocal %215 {approx = true} : vector<8x128xf32> -> vector<8x128xf32>
    %217 = arith.mulf %206, %216 : vector<8x128xf32>
    %218 = arith.cmpf one, %217, %217 : vector<8x128xf32>
    %cst_72 = arith.constant 0.000000e+00 : f32
    %219 = vector.broadcast %cst_72 : f32 to vector<8x128xf32>
    %220 = arith.select %218, %219, %217 : vector<8x128xi1>, vector<8x128xf32>
    %c0_73 = arith.constant 0 : index
    %c0_74 = arith.constant 0 : index
    %221 = vector.load %arg13[%c0_73, %c0_74] : memref<8x128xf32, #tpu.memory_space<vmem>>, vector<8x128xf32>
    tpu.vector_store %arg13[%c0_73, %c0_74], %220 {strides = array<i32>} : memref<8x128xf32, #tpu.memory_space<vmem>>, vector<8x128xf32>,
    %222 = vector.shape_cast %3 : vector<8x128xf32> to vector<1x8x128xf32>
    %223 = arith.mulf %6, %6 : vector<3x8x128xf32>
    %224 = vector.broadcast %222 : vector<1x8x128xf32> to vector<3x8x128xf32>
    %225 = arith.mulf %6, %224 : vector<3x8x128xf32>
    %cst_75 = arith.constant 1.000000e+00 : f32
    %226 = vector.broadcast %cst_75 : f32 to vector<3x8x128xf32>
    %227 = arith.subf %226, %223 : vector<3x8x128xf32>
    %228 = arith.mulf %7, %227 : vector<3x8x128xf32>
    %cst_76 = arith.constant 2.000000e+00 : f32
    %229 = vector.broadcast %cst_76 : f32 to vector<3x8x128xf32>
    %230 = arith.mulf %229, %225 : vector<3x8x128xf32>
    %cst_77 = arith.constant 1.000000e+00 : f32
    %231 = vector.broadcast %cst_77 : f32 to vector<3x8x128xf32>
    %232 = arith.subf %231, %230 : vector<3x8x128xf32>
    %233 = arith.addf %232, %223 : vector<3x8x128xf32>
    %234 = math.sqrt %233 : vector<3x8x128xf32>
    %235 = arith.mulf %233, %234 : vector<3x8x128xf32>
    %cst_78 = arith.constant 9.99999997E-7 : f32
    %236 = vector.broadcast %cst_78 : f32 to vector<3x8x128xf32>
    %237 = arith.addf %235, %236 : vector<3x8x128xf32>
    %238 = tpu.reciprocal %237 {approx = true} : vector<3x8x128xf32> -> vector<3x8x128xf32>
    %239 = arith.mulf %228, %238 : vector<3x8x128xf32>
    %cst_79 = arith.constant 1.000000e+00 : f32
    %240 = vector.broadcast %cst_79 : f32 to vector<3x8x128xf32>
    %241 = arith.subf %240, %7 : vector<3x8x128xf32>
    %242 = arith.mulf %241, %227 : vector<3x8x128xf32>
    %cst_80 = arith.constant 2.000000e+00 : f32
    %243 = vector.broadcast %cst_80 : f32 to vector<3x8x128xf32>
    %244 = arith.mulf %243, %225 : vector<3x8x128xf32>
    %cst_81 = arith.constant 1.000000e+00 : f32
    %245 = vector.broadcast %cst_81 : f32 to vector<3x8x128xf32>
    %246 = arith.addf %245, %244 : vector<3x8x128xf32>
    %247 = arith.addf %246, %223 : vector<3x8x128xf32>
    %248 = math.sqrt %247 : vector<3x8x128xf32>
    %249 = arith.mulf %247, %248 : vector<3x8x128xf32>
    %cst_82 = arith.constant 9.99999997E-7 : f32
    %250 = vector.broadcast %cst_82 : f32 to vector<3x8x128xf32>
    %251 = arith.addf %249, %250 : vector<3x8x128xf32>
    %252 = tpu.reciprocal %251 {approx = true} : vector<3x8x128xf32> -> vector<3x8x128xf32>
    %253 = arith.mulf %242, %252 : vector<3x8x128xf32>
    %254 = arith.addf %239, %253 : vector<3x8x128xf32>
    %255 = arith.cmpf one, %254, %254 : vector<3x8x128xf32>
    %cst_83 = arith.constant 0.000000e+00 : f32
    %256 = vector.broadcast %cst_83 : f32 to vector<3x8x128xf32>
    %257 = arith.select %255, %256, %254 : vector<3x8x128xi1>, vector<3x8x128xf32>
    %c0_84 = arith.constant 0 : index
    %c0_85 = arith.constant 0 : index
    %c0_86 = arith.constant 0 : index
    %258 = vector.load %arg10[%c0_84, %c0_85, %c0_86] : memref<3x8x128xf32, #tpu.memory_space<vmem>>, vector<3x8x128xf32>
    tpu.vector_store %arg10[%c0_84, %c0_85, %c0_86], %257 {strides = array<i32>} : memref<3x8x128xf32, #tpu.memory_space<vmem>>, vector<3x8x128xf32>,
    %cst_87 = arith.constant 1.000000e+00 : f32
    %259 = vector.broadcast %cst_87 : f32 to vector<8x128xf32>
    %260 = arith.addf %259, %137 : vector<8x128xf32>
    %261 = arith.divf %260, %137 : vector<8x128xf32>
    %262 = math.absf %261 : vector<8x128xf32>
    %263 = math.log %262 : vector<8x128xf32>
    %cst_88 = arith.constant 1.000000e+00 : f32
    %264 = vector.broadcast %cst_88 : f32 to vector<8x128xf32>
    %265 = arith.addf %264, %150 : vector<8x128xf32>
    %266 = arith.divf %265, %150 : vector<8x128xf32>
    %267 = math.absf %266 : vector<8x128xf32>
    %268 = math.log %267 : vector<8x128xf32>
    %cst_89 = arith.constant 1.000000e+00 : f32
    %269 = vector.broadcast %cst_89 : f32 to vector<3x8x128xf32>
    %270 = arith.subf %269, %5 : vector<3x8x128xf32>
    %271 = math.sqrt %270 : vector<3x8x128xf32>
    %cst_90 = arith.constant 1.000000e+00 : f32
    %272 = vector.broadcast %cst_90 : f32 to vector<3x8x128xf32>
    %273 = arith.subf %272, %271 : vector<3x8x128xf32>
    %cst_91 = arith.constant 1.000000e+00 : f32
    %274 = vector.broadcast %cst_91 : f32 to vector<3x8x128xf32>
    %275 = arith.addf %274, %271 : vector<3x8x128xf32>
    %276 = tpu.reciprocal %275 {approx = true} : vector<3x8x128xf32> -> vector<3x8x128xf32>
    %277 = arith.mulf %273, %276 : vector<3x8x128xf32>
    %278 = vector.shape_cast %137 : vector<8x128xf32> to vector<1x8x128xf32>
    %279 = vector.broadcast %278 : vector<1x8x128xf32> to vector<3x8x128xf32>
    %280 = arith.mulf %5, %279 : vector<3x8x128xf32>
    %cst_92 = arith.constant 2.000000e+00 : f32
    %281 = vector.broadcast %cst_92 : f32 to vector<3x8x128xf32>
    %282 = arith.mulf %281, %277 : vector<3x8x128xf32>
    %283 = vector.broadcast %278 : vector<1x8x128xf32> to vector<3x8x128xf32>
    %284 = arith.mulf %282, %283 : vector<3x8x128xf32>
    %cst_93 = arith.constant 1.000000e+00 : f32
    %285 = vector.broadcast %cst_93 : f32 to vector<3x8x128xf32>
    %286 = arith.subf %285, %284 : vector<3x8x128xf32>
    %cst_94 = arith.constant 5.000000e-01 : f32
    %287 = vector.broadcast %cst_94 : f32 to vector<3x8x128xf32>
    %288 = arith.mulf %286, %287 : vector<3x8x128xf32>
    %289 = vector.shape_cast %263 : vector<8x128xf32> to vector<1x8x128xf32>
    %290 = vector.broadcast %289 : vector<1x8x128xf32> to vector<3x8x128xf32>
    %291 = arith.mulf %288, %290 : vector<3x8x128xf32>
    %292 = arith.addf %277, %291 : vector<3x8x128xf32>
    %293 = arith.mulf %280, %292 : vector<3x8x128xf32>
    %cst_95 = arith.constant 1.000000e+00 : f32
    %294 = vector.broadcast %cst_95 : f32 to vector<3x8x128xf32>
    %295 = arith.subf %294, %293 : vector<3x8x128xf32>
    %296 = tpu.reciprocal %295 {approx = true} : vector<3x8x128xf32> -> vector<3x8x128xf32>
    %297 = arith.cmpf one, %296, %296 : vector<3x8x128xf32>
    %cst_96 = arith.constant 1.000000e+00 : f32
    %298 = vector.broadcast %cst_96 : f32 to vector<3x8x128xf32>
    %299 = arith.select %297, %298, %296 : vector<3x8x128xi1>, vector<3x8x128xf32>
    %300 = vector.shape_cast %150 : vector<8x128xf32> to vector<1x8x128xf32>
    %301 = vector.broadcast %300 : vector<1x8x128xf32> to vector<3x8x128xf32>
    %302 = arith.mulf %5, %301 : vector<3x8x128xf32>
    %cst_97 = arith.constant 2.000000e+00 : f32
    %303 = vector.broadcast %cst_97 : f32 to vector<3x8x128xf32>
    %304 = arith.mulf %303, %277 : vector<3x8x128xf32>
    %305 = vector.broadcast %300 : vector<1x8x128xf32> to vector<3x8x128xf32>
    %306 = arith.mulf %304, %305 : vector<3x8x128xf32>
    %cst_98 = arith.constant 1.000000e+00 : f32
    %307 = vector.broadcast %cst_98 : f32 to vector<3x8x128xf32>
    %308 = arith.subf %307, %306 : vector<3x8x128xf32>
    %cst_99 = arith.constant 5.000000e-01 : f32
    %309 = vector.broadcast %cst_99 : f32 to vector<3x8x128xf32>
    %310 = arith.mulf %308, %309 : vector<3x8x128xf32>
    %311 = vector.shape_cast %268 : vector<8x128xf32> to vector<1x8x128xf32>
    %312 = vector.broadcast %311 : vector<1x8x128xf32> to vector<3x8x128xf32>
    %313 = arith.mulf %310, %312 : vector<3x8x128xf32>
    %314 = arith.addf %277, %313 : vector<3x8x128xf32>
    %315 = arith.mulf %302, %314 : vector<3x8x128xf32>
    %cst_100 = arith.constant 1.000000e+00 : f32
    %316 = vector.broadcast %cst_100 : f32 to vector<3x8x128xf32>
    %317 = arith.subf %316, %315 : vector<3x8x128xf32>
    %318 = tpu.reciprocal %317 {approx = true} : vector<3x8x128xf32> -> vector<3x8x128xf32>
    %319 = arith.cmpf one, %318, %318 : vector<3x8x128xf32>
    %cst_101 = arith.constant 1.000000e+00 : f32
    %320 = vector.broadcast %cst_101 : f32 to vector<3x8x128xf32>
    %321 = arith.select %319, %320, %318 : vector<3x8x128xi1>, vector<3x8x128xf32>
    %c0_102 = arith.constant 0 : index
    %c0_103 = arith.constant 0 : index
    %c0_104 = arith.constant 0 : index
    %322 = vector.load %arg11[%c0_102, %c0_103, %c0_104] : memref<3x8x128xf32, #tpu.memory_space<vmem>>, vector<3x8x128xf32>
    tpu.vector_store %arg11[%c0_102, %c0_103, %c0_104], %299 {strides = array<i32>} : memref<3x8x128xf32, #tpu.memory_space<vmem>>, vector<3x8x128xf32>,
    %c0_105 = arith.constant 0 : index
    %c0_106 = arith.constant 0 : index
    %c0_107 = arith.constant 0 : index
    %323 = vector.load %arg12[%c0_105, %c0_106, %c0_107] : memref<3x8x128xf32, #tpu.memory_space<vmem>>, vector<3x8x128xf32>
    tpu.vector_store %arg12[%c0_105, %c0_106, %c0_107], %321 {strides = array<i32>} : memref<3x8x128xf32, #tpu.memory_space<vmem>>, vector<3x8x128xf32>,
    %324 = arith.addf %137, %150 : vector<8x128xf32>
    %325 = arith.mulf %324, %0 : vector<8x128xf32>
    %326 = tpu.reciprocal %325 {approx = true} : vector<8x128xf32> -> vector<8x128xf32>
    %327 = arith.mulf %137, %326 : vector<8x128xf32>
    %cst_108 = arith.constant 0.0795774683 : f32
    %328 = vector.broadcast %cst_108 : f32 to vector<3x8x128xf32>
    %329 = arith.mulf %5, %328 : vector<3x8x128xf32>
    %330 = vector.shape_cast %327 : vector<8x128xf32> to vector<1x8x128xf32>
    %331 = vector.broadcast %330 : vector<1x8x128xf32> to vector<3x8x128xf32>
    %332 = arith.mulf %329, %331 : vector<3x8x128xf32>
    %333 = arith.mulf %299, %321 : vector<3x8x128xf32>
    %334 = arith.addf %257, %333 : vector<3x8x128xf32>
    %cst_109 = arith.constant 1.000000e+00 : f32
    %335 = vector.broadcast %cst_109 : f32 to vector<3x8x128xf32>
    %336 = arith.subf %334, %335 : vector<3x8x128xf32>
    %337 = arith.mulf %332, %336 : vector<3x8x128xf32>
    %338 = vector.shape_cast %220 : vector<8x128xf32> to vector<1x8x128xf32>
    %339 = vector.broadcast %338 : vector<1x8x128xf32> to vector<3x8x128xf32>
    %340 = arith.mulf %337, %339 : vector<3x8x128xf32>
    %c0_110 = arith.constant 0 : index
    %c0_111 = arith.constant 0 : index
    %c0_112 = arith.constant 0 : index
    %341 = vector.load %arg9[%c0_110, %c0_111, %c0_112] : memref<3x8x128xf32, #tpu.memory_space<vmem>>, vector<3x8x128xf32>
    tpu.vector_store %arg9[%c0_110, %c0_111, %c0_112], %340 {strides = array<i32>} : memref<3x8x128xf32, #tpu.memory_space<vmem>>, vector<3x8x128xf32>,
    return
  }
  func.func @transform_0(%arg0: i32) -> (i32, i32) {
    %c0_i32 = arith.constant 0 : i32
    %c0_i32_0 = arith.constant 0 : i32
    return %c0_i32, %arg0 : i32, i32
  }
  func.func @transform_1(%arg0: i32) -> (i32, i32) {
    %c0_i32 = arith.constant 0 : i32
    %c0_i32_0 = arith.constant 0 : i32
    return %c0_i32, %arg0 : i32, i32
  }
  func.func @transform_2(%arg0: i32) -> (i32, i32) {
    %c0_i32 = arith.constant 0 : i32
    %c0_i32_0 = arith.constant 0 : i32
    return %c0_i32, %arg0 : i32, i32
  }
  func.func @transform_3(%arg0: i32) -> (i32, i32) {
    %c0_i32 = arith.constant 0 : i32
    %c0_i32_0 = arith.constant 0 : i32
    return %c0_i32, %arg0 : i32, i32
  }
  func.func @transform_4(%arg0: i32) -> (i32, i32) {
    %c0_i32 = arith.constant 0 : i32
    %c0_i32_0 = arith.constant 0 : i32
    return %c0_i32, %arg0 : i32, i32
  }
  func.func @transform_5(%arg0: i32) -> (i32, i32, i32) {
    %c0_i32 = arith.constant 0 : i32
    %c0_i32_0 = arith.constant 0 : i32
    %c0_i32_1 = arith.constant 0 : i32
    return %c0_i32, %c0_i32_0, %arg0 : i32, i32, i32
  }
  func.func @transform_6(%arg0: i32) -> (i32, i32, i32) {
    %c0_i32 = arith.constant 0 : i32
    %c0_i32_0 = arith.constant 0 : i32
    %c0_i32_1 = arith.constant 0 : i32
    return %c0_i32, %c0_i32_0, %arg0 : i32, i32, i32
  }
  func.func @transform_7(%arg0: i32) -> (i32, i32, i32) {
    %c0_i32 = arith.constant 0 : i32
    %c0_i32_0 = arith.constant 0 : i32
    %c0_i32_1 = arith.constant 0 : i32
    return %c0_i32, %c0_i32_0, %arg0 : i32, i32, i32
  }
  func.func @transform_8(%arg0: i32) -> (i32, i32, i32) {
    %c0_i32 = arith.constant 0 : i32
    %c0_i32_0 = arith.constant 0 : i32
    %c0_i32_1 = arith.constant 0 : i32
    return %c0_i32, %c0_i32_0, %arg0 : i32, i32, i32
  }
  func.func @transform_9(%arg0: i32) -> (i32, i32, i32) {
    %c0_i32 = arith.constant 0 : i32
    %c0_i32_0 = arith.constant 0 : i32
    %c0_i32_1 = arith.constant 0 : i32
    return %c0_i32, %c0_i32_0, %arg0 : i32, i32, i32
  }
  func.func @transform_10(%arg0: i32) -> (i32, i32, i32) {
    %c0_i32 = arith.constant 0 : i32
    %c0_i32_0 = arith.constant 0 : i32
    %c0_i32_1 = arith.constant 0 : i32
    return %c0_i32, %c0_i32_0, %arg0 : i32, i32, i32
  }
  func.func @transform_11(%arg0: i32) -> (i32, i32, i32) {
    %c0_i32 = arith.constant 0 : i32
    %c0_i32_0 = arith.constant 0 : i32
    %c0_i32_1 = arith.constant 0 : i32
    return %c0_i32, %c0_i32_0, %arg0 : i32, i32, i32
  }
  func.func @transform_12(%arg0: i32) -> (i32, i32) {
    %c0_i32 = arith.constant 0 : i32
    %c0_i32_0 = arith.constant 0 : i32
    return %c0_i32, %arg0 : i32, i32
  }
  func.func @transform_13(%arg0: i32) -> (i32, i32) {
    %c0_i32 = arith.constant 0 : i32
    %c0_i32_0 = arith.constant 0 : i32
    return %c0_i32, %arg0 : i32, i32
  }
  func.func @transform_14(%arg0: i32) -> (i32, i32) {
    %c0_i32 = arith.constant 0 : i32
    %c0_i32_0 = arith.constant 0 : i32
    return %c0_i32, %arg0 : i32, i32
  }
}

</mosaic_0001>

<llo_original>
// kernel: tpu_custom_call.1
$region0: #{tpu_custom_call.1}
  #allocation0 [shape = 'u32[]', space=smem, size = 0x4, offset = 0x4, fixed_abs, tag = 'smem constant byte address 0x4 - core index']
  #allocation1 [shape = 'u32[72,128]{1,0:T(1,128)}', space=vmem, size = 0x9000, scoped, tag = 'internal scratch']
  %s0 = inlined_call_operand.hbm [shape: f32[8,128], index: 0, kind: input, shape index: {}]
  %s1 = inlined_call_operand.hbm [shape: f32[8,128], index: 1, kind: input, shape index: {}]
  %s2 = inlined_call_operand.hbm [shape: f32[8,128], index: 2, kind: input, shape index: {}]
  %s3 = inlined_call_operand.hbm [shape: f32[8,128], index: 3, kind: input, shape index: {}]
  %s4 = inlined_call_operand.hbm [shape: f32[8,128], index: 4, kind: input, shape index: {}]
  %s5 = inlined_call_operand.hbm [shape: f32[3,8,128], index: 5, kind: input, shape index: {}]
  %s6 = inlined_call_operand.hbm [shape: f32[3,8,128], index: 6, kind: input, shape index: {}]
  %s7 = inlined_call_operand.hbm [shape: f32[3,8,128], index: 7, kind: input, shape index: {}]
  %s8 = inlined_call_operand.hbm [shape: f32[3,8,128], index: 8, kind: output, shape index: {0}]
  %s9 = inlined_call_operand.hbm [shape: f32[3,8,128], index: 9, kind: output, shape index: {1}]
  %s10 = inlined_call_operand.hbm [shape: f32[3,8,128], index: 10, kind: output, shape index: {2}]
  %s11 = inlined_call_operand.hbm [shape: f32[3,8,128], index: 11, kind: output, shape index: {3}]
  %s12 = inlined_call_operand.hbm [shape: f32[8,128], index: 12, kind: output, shape index: {4}]
  %s13 = inlined_call_operand.hbm [shape: f32[8,128], index: 13, kind: output, shape index: {5}]
  %s14 = inlined_call_operand.hbm [shape: f32[8,128], index: 14, kind: output, shape index: {6}]
  %15 = xla_tuple %s8, %s9, %s10, %s11, %s12, %s13, %s14
  %s16 = sld [smem:[#allocation0]]
  $region122: #{tpu_custom_call.1} parent=0
    _
  %s18 = ssub.s32 1, %s16
  %s19 = scalar_select 0, %s18, %s16
  $region1: #{tpu_custom_call.1} parent=0
    #allocation2 [shape = 'u8[4096]{0}', space=vmem, size = 0x1000, scoped, tag = 'input window, operand 0, single buffered']
    #allocation3 [shape = 's32[1]{0}', space=sflag, size = 0x4, scoped, tag = 'scoped memory for tpu_custom_call.1']
    #allocation4 [shape = 's32[1]{0}', space=sflag, size = 0x4, scoped, tag = 'scoped memory for tpu_custom_call.1']
    #allocation5 [shape = 'u8[4096]{0}', space=vmem, size = 0x1000, scoped, tag = 'input window, operand 1, single buffered']
    #allocation6 [shape = 's32[1]{0}', space=sflag, size = 0x4, scoped, tag = 'scoped memory for tpu_custom_call.1']
    #allocation7 [shape = 'u8[4096]{0}', space=vmem, size = 0x1000, scoped, tag = 'input window, operand 2, single buffered']
    #allocation8 [shape = 'u8[4096]{0}', space=vmem, size = 0x1000, scoped, tag = 'input window, operand 3, single buffered']
    #allocation9 [shape = 's32[1]{0}', space=sflag, size = 0x4, scoped, tag = 'scoped memory for tpu_custom_call.1']
    #allocation10 [shape = 'u8[4096]{0}', space=vmem, size = 0x1000, scoped, tag = 'input window, operand 4, single buffered']
    #allocation11 [shape = 'u8[12288]{0}', space=vmem, size = 0x3000, scoped, tag = 'input window, operand 5, single buffered']
    #allocation12 [shape = 's32[1]{0}', space=sflag, size = 0x4, scoped, tag = 'scoped memory for tpu_custom_call.1']
    #allocation13 [shape = 'u8[12288]{0}', space=vmem, size = 0x3000, scoped, tag = 'input window, operand 6, single buffered']
    #allocation14 [shape = 'u8[12288]{0}', space=vmem, size = 0x3000, scoped, tag = 'input window, operand 7, single buffered']
    #allocation15 [shape = 's32[1]{0}', space=sflag, size = 0x4, scoped, tag = 'scoped memory for tpu_custom_call.1']
    #allocation16 [shape = 'u8[12288]{0}', space=vmem, size = 0x3000, scoped, tag = 'output window, operand 0, single buffered']
    #allocation17 [shape = 'u8[12288]{0}', space=vmem, size = 0x3000, scoped, tag = 'output window, operand 1, single buffered']
    #allocation18 [shape = 's32[1]{0}', space=sflag, size = 0x4, scoped, tag = 'scoped memory for tpu_custom_call.1']
    #allocation19 [shape = 'u8[12288]{0}', space=vmem, size = 0x3000, scoped, tag = 'output window, operand 2, single buffered']
    #allocation20 [shape = 'u8[12288]{0}', space=vmem, size = 0x3000, scoped, tag = 'output window, operand 3, single buffered']
    #allocation21 [shape = 's32[1]{0}', space=sflag, size = 0x4, scoped, tag = 'scoped memory for tpu_custom_call.1']
    #allocation22 [shape = 'u8[4096]{0}', space=vmem, size = 0x1000, scoped, tag = 'output window, operand 4, single buffered']
    #allocation23 [shape = 'u8[4096]{0}', space=vmem, size = 0x1000, scoped, tag = 'output window, operand 5, single buffered']
    #allocation24 [shape = 's32[1]{0}', space=sflag, size = 0x4, scoped, tag = 'scoped memory for tpu_custom_call.1']
    #allocation25 [shape = 'u8[4096]{0}', space=vmem, size = 0x1000, scoped, tag = 'output window, operand 6, single buffered']
    %20 = vsyncpa [#allocation3], 0
    %21 = vsyncpa [#allocation6], 0
    %22 = vsyncpa [#allocation9], 0
    %23 = vsyncpa [#allocation12], 0
    %24 = vsyncpa [#allocation15], 0
    %25 = vsyncpa [#allocation4], 0
    %26 = vsyncpa [#allocation18], 0
    %27 = vsyncpa [#allocation21], 0
    %28 = vsyncpa [#allocation24], 0
    // Predicated region
    $region2: #{tpu_custom_call.1} parent=1 // pred_check
      _
    $region3: #{tpu_custom_call.1} parent=1 // pred_check_branch
      %30 = sbr.rel (0) target = $region5
    $region4: #{tpu_custom_call.1} parent=1 // pred_region
      %32 = vsyncadd [#allocation3], 0
      %s34 = sshll.u32 %s0, 4
      %s35 = int_to_ptr.hbm [resolvable:$true] %s34
      %s36 = sshll.u32 [#allocation2], 4
      %s37 = int_to_ptr.vmem [resolvable:$true] %s36
      %39 = dma.hbm_to_vmem [thread:$0]  %s35, 128, %s37, [#allocation3]
    $region5: #{tpu_custom_call.1} parent=1 // pred_fallthru
      _
    // Predicated region
    $region6: #{tpu_custom_call.1} parent=1 // pred_check
      _
    $region7: #{tpu_custom_call.1} parent=1 // pred_check_branch
      %41 = sbr.rel (0) target = $region9
    $region8: #{tpu_custom_call.1} parent=1 // pred_region
      %43 = vsyncadd [#allocation6], 0
      %s45 = sshll.u32 %s1, 4
      %s46 = int_to_ptr.hbm [resolvable:$true] %s45
      %s47 = sshll.u32 [#allocation5], 4
      %s48 = int_to_ptr.vmem [resolvable:$true] %s47
      %50 = dma.hbm_to_vmem [thread:$0]  %s46, 128, %s48, [#allocation6]
    $region9: #{tpu_custom_call.1} parent=1 // pred_fallthru
      _
    // Predicated region
    $region10: #{tpu_custom_call.1} parent=1 // pred_check
      _
    $region11: #{tpu_custom_call.1} parent=1 // pred_check_branch
      %52 = sbr.rel (0) target = $region13
    $region12: #{tpu_custom_call.1} parent=1 // pred_region
      %54 = vsyncadd [#allocation6], 0
      %s56 = sshll.u32 %s2, 4
      %s57 = int_to_ptr.hbm [resolvable:$true] %s56
      %s58 = sshll.u32 [#allocation7], 4
      %s59 = int_to_ptr.vmem [resolvable:$true] %s58
      %61 = dma.hbm_to_vmem [thread:$0]  %s57, 128, %s59, [#allocation6]
    $region13: #{tpu_custom_call.1} parent=1 // pred_fallthru
      _
    // Predicated region
    $region14: #{tpu_custom_call.1} parent=1 // pred_check
      _
    $region15: #{tpu_custom_call.1} parent=1 // pred_check_branch
      %63 = sbr.rel (0) target = $region17
    $region16: #{tpu_custom_call.1} parent=1 // pred_region
      %65 = vsyncadd [#allocation9], 0
      %s67 = sshll.u32 %s3, 4
      %s68 = int_to_ptr.hbm [resolvable:$true] %s67
      %s69 = sshll.u32 [#allocation8], 4
      %s70 = int_to_ptr.vmem [resolvable:$true] %s69
      %72 = dma.hbm_to_vmem [thread:$0]  %s68, 128, %s70, [#allocation9]
    $region17: #{tpu_custom_call.1} parent=1 // pred_fallthru
      _
    // Predicated region
    $region18: #{tpu_custom_call.1} parent=1 // pred_check
      _
    $region19: #{tpu_custom_call.1} parent=1 // pred_check_branch
      %74 = sbr.rel (0) target = $region21
    $region20: #{tpu_custom_call.1} parent=1 // pred_region
      %76 = vsyncadd [#allocation9], 0
      %s78 = sshll.u32 %s4, 4
      %s79 = int_to_ptr.hbm [resolvable:$true] %s78
      %s80 = sshll.u32 [#allocation10], 4
      %s81 = int_to_ptr.vmem [resolvable:$true] %s80
      %83 = dma.hbm_to_vmem [thread:$0]  %s79, 128, %s81, [#allocation9]
    $region21: #{tpu_custom_call.1} parent=1 // pred_fallthru
      _
    // Predicated region
    $region22: #{tpu_custom_call.1} parent=1 // pred_check
      _
    $region23: #{tpu_custom_call.1} parent=1 // pred_check_branch
      %85 = sbr.rel (0) target = $region25
    $region24: #{tpu_custom_call.1} parent=1 // pred_region
      %87 = vsyncadd [#allocation12], 0
      %s88 = sshll.u32 %s5, 4
      %s89 = int_to_ptr.hbm [resolvable:$true] %s88
      %s90 = sshll.u32 [#allocation11], 4
      %s91 = int_to_ptr.vmem [resolvable:$true] %s90
      %96 = dma.hbm_to_vmem [thread:$0]  %s89, 384, %s91, [#allocation12], 128, 128, 8
    $region25: #{tpu_custom_call.1} parent=1 // pred_fallthru
      _
    // Predicated region
    $region26: #{tpu_custom_call.1} parent=1 // pred_check
      _
    $region27: #{tpu_custom_call.1} parent=1 // pred_check_branch
      %98 = sbr.rel (0) target = $region29
    $region28: #{tpu_custom_call.1} parent=1 // pred_region
      %100 = vsyncadd [#allocation12], 0
      %s101 = sshll.u32 %s6, 4
      %s102 = int_to_ptr.hbm [resolvable:$true] %s101
      %s103 = sshll.u32 [#allocation13], 4
      %s104 = int_to_ptr.vmem [resolvable:$true] %s103
      %109 = dma.hbm_to_vmem [thread:$0]  %s102, 384, %s104, [#allocation12], 128, 128, 8
    $region29: #{tpu_custom_call.1} parent=1 // pred_fallthru
      _
    // Predicated region
    $region30: #{tpu_custom_call.1} parent=1 // pred_check
      _
    $region31: #{tpu_custom_call.1} parent=1 // pred_check_branch
      %111 = sbr.rel (0) target = $region33
    $region32: #{tpu_custom_call.1} parent=1 // pred_region
      %113 = vsyncadd [#allocation15], 0
      %s114 = sshll.u32 %s7, 4
      %s115 = int_to_ptr.hbm [resolvable:$true] %s114
      %s116 = sshll.u32 [#allocation14], 4
      %s117 = int_to_ptr.vmem [resolvable:$true] %s116
      %122 = dma.hbm_to_vmem [thread:$0]  %s115, 384, %s117, [#allocation15], 128, 128, 8
    $region33: #{tpu_custom_call.1} parent=1 // pred_fallthru
      _
    // Predicated region
    $region34: #{tpu_custom_call.1} parent=1 // pred_check
      _
    $region35: #{tpu_custom_call.1} parent=1 // pred_check_branch
      %124 = sbr.rel (0) target = $region37
    $region36: #{tpu_custom_call.1} parent=1 // pred_region
      %126 = dma.done [#allocation3], 128
    $region37: #{tpu_custom_call.1} parent=1 // pred_fallthru
      _
    // Predicated region
    $region38: #{tpu_custom_call.1} parent=1 // pred_check
      _
    $region39: #{tpu_custom_call.1} parent=1 // pred_check_branch
      %128 = sbr.rel (0) target = $region41
    $region40: #{tpu_custom_call.1} parent=1 // pred_region
      %130 = dma.done [#allocation6], 128
    $region41: #{tpu_custom_call.1} parent=1 // pred_fallthru
      _
    // Predicated region
    $region42: #{tpu_custom_call.1} parent=1 // pred_check
      _
    $region43: #{tpu_custom_call.1} parent=1 // pred_check_branch
      %132 = sbr.rel (0) target = $region45
    $region44: #{tpu_custom_call.1} parent=1 // pred_region
      %134 = dma.done [#allocation6], 128
    $region45: #{tpu_custom_call.1} parent=1 // pred_fallthru
      _
    // Predicated region
    $region46: #{tpu_custom_call.1} parent=1 // pred_check
      _
    $region47: #{tpu_custom_call.1} parent=1 // pred_check_branch
      %136 = sbr.rel (0) target = $region49
    $region48: #{tpu_custom_call.1} parent=1 // pred_region
      %138 = dma.done [#allocation9], 128
    $region49: #{tpu_custom_call.1} parent=1 // pred_fallthru
      _
    // Predicated region
    $region50: #{tpu_custom_call.1} parent=1 // pred_check
      _
    $region51: #{tpu_custom_call.1} parent=1 // pred_check_branch
      %140 = sbr.rel (0) target = $region53
    $region52: #{tpu_custom_call.1} parent=1 // pred_region
      %142 = dma.done [#allocation9], 128
    $region53: #{tpu_custom_call.1} parent=1 // pred_fallthru
      _
    // Predicated region
    $region54: #{tpu_custom_call.1} parent=1 // pred_check
      _
    $region55: #{tpu_custom_call.1} parent=1 // pred_check_branch
      %144 = sbr.rel (0) target = $region57
    $region56: #{tpu_custom_call.1} parent=1 // pred_region
      %146 = dma.done [#allocation12], 384
    $region57: #{tpu_custom_call.1} parent=1 // pred_fallthru
      _
    // Predicated region
    $region58: #{tpu_custom_call.1} parent=1 // pred_check
      _
    $region59: #{tpu_custom_call.1} parent=1 // pred_check_branch
      %148 = sbr.rel (0) target = $region61
    $region60: #{tpu_custom_call.1} parent=1 // pred_region
      %150 = dma.done [#allocation12], 384
    $region61: #{tpu_custom_call.1} parent=1 // pred_fallthru
      _
    // Predicated region
    $region62: #{tpu_custom_call.1} parent=1 // pred_check
      _
    $region63: #{tpu_custom_call.1} parent=1 // pred_check_branch
      %152 = sbr.rel (0) target = $region65
    $region64: #{tpu_custom_call.1} parent=1 // pred_region
      %154 = dma.done [#allocation15], 384
    $region65: #{tpu_custom_call.1} parent=1 // pred_fallthru
      _
    %v155 = vld [vmem:[#allocation2] sm:$0xff]
    %v156 = vld [vmem:[#allocation5] sm:$0xff]
    %v157 = vld [vmem:[#allocation7] sm:$0xff]
    %v158 = vld [vmem:[#allocation8] sm:$0xff]
    %v159 = vld [vmem:[#allocation10] sm:$0xff]
    %v160 = vld [vmem:[#allocation11] sm:$0xff]
    %v161 = vld [vmem:[#allocation11 + $0x8] sm:$0xff]
    %v162 = vld [vmem:[#allocation11 + $0x10] sm:$0xff]
    %v163 = vld [vmem:[#allocation13] sm:$0xff]
    %v164 = vld [vmem:[#allocation13 + $0x8] sm:$0xff]
    %v165 = vld [vmem:[#allocation13 + $0x10] sm:$0xff]
    %v166 = vld [vmem:[#allocation14] sm:$0xff]
    %v167 = vld [vmem:[#allocation14 + $0x8] sm:$0xff]
    %v168 = vld [vmem:[#allocation14 + $0x10] sm:$0xff]
    %v169 = vmul.f32 %v155, %v155
    %v170 = vsub.f32 1.0, %v169
    %v171 = vmax.f32 %v170, 0.0
    %v172 = vrsqrt.pop %v171
    %v173 = vmul.f32 %v172, %v171
    %v174 = vmul.f32 %v173, %v172
    %v175 = vmul.f32 0.5, %v174
    %v176 = vsub.f32 1.5, %v175
    %v177 = vmul.f32 %v172, %v176
    %v178 = vmul.f32 %v171, %v177
    %vm179 = vcmp.eq.f32.partialorder %v171, inf
    %v180 = vsel %vm179, %v171, %v178
    %vm181 = vcmp.eq.f32.partialorder %v171, 0.0
    %v182 = vand.u32 %v171, 2147483648
    %v183 = vsel %vm181, %v182, %v180
    %v184 = vmul.f32 %v156, %v156
    %v185 = vsub.f32 1.0, %v184
    %v186 = vmax.f32 %v185, 0.0
    %v187 = vrsqrt.pop %v186
    %v188 = vmul.f32 %v187, %v186
    %v189 = vmul.f32 %v188, %v187
    %v190 = vmul.f32 0.5, %v189
    %v191 = vsub.f32 1.5, %v190
    %v192 = vmul.f32 %v187, %v191
    %v193 = vmul.f32 %v186, %v192
    %vm194 = vcmp.eq.f32.partialorder %v186, inf
    %v195 = vsel %vm194, %v186, %v193
    %vm196 = vcmp.eq.f32.partialorder %v186, 0.0
    %v197 = vand.u32 %v186, 2147483648
    %v198 = vsel %vm196, %v197, %v195
    %v199 = vmul.f32 %v155, %v156
    %v200 = vsub.f32 %v158, %v199
    %v201 = vmul.f32 %v183, %v198
    %v202 = vadd.f32 %v201, 1e-09
    %v203 = vrcp.pop %v202
    %v204 = vmul.f32 %v202, %v203
    %v205 = vsub.f32 1.0, %v204
    %v206 = vmul.f32 %v203, %v205
    %v207 = vadd.f32 %v203, %v206
    %vm208 = vweird.f32 %v202
    %vm209 = vweird.f32 %v203
    %vm210 = vmor %vm208, %vm209
    %v211 = vsel %vm210, %v203, %v207
    %v212 = vand.u32 2147483647, %v202
    %vm213 = vcmp.eq.f32.partialorder %v212, 8.507059e+37
    %v214 = vand.u32 %v202, 2147483648
    %v215 = vor.u32 1.1754944e-38, %v214
    %v216 = vsel %vm213, %v215, %v211
    %v217 = vmul.f32 %v200, %v216
    %v218 = vmax.f32 %v217, -1.0
    %v219 = vmin.f32 %v218, 1.0
    %v220 = vmul.f32 %v155, 1e-05
    %v221 = vadd.f32 %v183, %v220
    %v222 = vmul.f32 %v183, 1e-05
    %v223 = vsub.f32 %v155, %v222
    %v224 = vmul.f32 %v156, 1e-05
    %v225 = vadd.f32 %v198, %v224
    %v226 = vmul.f32 %v198, 1e-05
    %v227 = vsub.f32 %v156, %v226
    %v228 = vrcp.pop %v221
    %v229 = vmul.f32 %v221, %v228
    %v230 = vsub.f32 1.0, %v229
    %v231 = vmul.f32 %v228, %v230
    %v232 = vadd.f32 %v228, %v231
    %vm233 = vweird.f32 %v221
    %vm234 = vweird.f32 %v228
    %vm235 = vmor %vm233, %vm234
    %v236 = vsel %vm235, %v228, %v232
    %v237 = vand.u32 2147483647, %v221
    %vm238 = vcmp.eq.f32.partialorder %v237, 8.507059e+37
    %v239 = vand.u32 %v221, 2147483648
    %v240 = vor.u32 1.1754944e-38, %v239
    %v241 = vsel %vm238, %v240, %v236
    %v242 = vmul.f32 %v223, %v241
    %v243 = vrcp.pop %v225
    %v244 = vmul.f32 %v225, %v243
    %v245 = vsub.f32 1.0, %v244
    %v246 = vmul.f32 %v243, %v245
    %v247 = vadd.f32 %v243, %v246
    %vm248 = vweird.f32 %v225
    %vm249 = vweird.f32 %v243
    %vm250 = vmor %vm248, %vm249
    %v251 = vsel %vm250, %v243, %v247
    %v252 = vand.u32 2147483647, %v225
    %vm253 = vcmp.eq.f32.partialorder %v252, 8.507059e+37
    %v254 = vand.u32 %v225, 2147483648
    %v255 = vor.u32 1.1754944e-38, %v254
    %v256 = vsel %vm253, %v255, %v251
    %v257 = vmul.f32 %v227, %v256
    %v258 = vand.u32 2147483647, %v159
    %vm259 = vcmp.le.f32.partialorder %v258, 0.7853982
    %vm260 = vcmp.lt.s32.totalorder %v159, 0
    %v261 = vand.u32 %v159, 2139095040
    %v262 = vshrl.u32 %v261, 23
    %v263 = vsub.s32 %v262, 127
    %v264 = vand.u32 2147483647, %v159
    %v265 = vand.u32 %v264, 8388607
    %v266 = vor.u32 %v265, 8388608
    %v267 = vsub.s32 0, %v266
    %v268 = vadd.s32 %v263, 1
    %vm269 = vcmp.gt.s32.totalorder %v268, 0
    %v270 = vsel %vm269, %v268, 0
    %v271 = vshrl.u32 %v270, 5
    %v272 = vand.u32 %v270, 31
    %v273 = vsub.s32 32, %v272
    %v274 = vshrl.u32 683565275, %v273
    %v275 = vshll.u32 683565275, %v272
    %v276 = vshrl.u32 2475754826, %v273
    %v277 = vor.u32 %v275, %v276
    %v278 = vshll.u32 2475754826, %v272
    %v279 = vshrl.u32 2131351028, %v273
    %v280 = vor.u32 %v278, %v279
    %v281 = vshll.u32 2131351028, %v272
    %v282 = vshrl.u32 2102212464, %v273
    %v283 = vor.u32 %v281, %v282
    %v284 = vshll.u32 2102212464, %v272
    %v285 = vshrl.u32 920167782, %v273
    %v286 = vor.u32 %v284, %v285
    %v287 = vshll.u32 920167782, %v272
    %v288 = vshrl.u32 1326507024, %v273
    %v289 = vor.u32 %v287, %v288
    %vm290 = vcmp.lt.s32.totalorder %v271, 1
    %vm291 = vcmp.lt.s32.totalorder %v271, 2
    %vm292 = vcmp.lt.s32.totalorder %v271, 3
    %vm293 = vcmp.lt.s32.totalorder %v271, 4
    %v294 = vsel %vm290, %v274, %v277
    %v295 = vsel %vm293, %v283, 2102212464
    %v296 = vsel %vm292, %v280, %v295
    %v297 = vsel %vm291, %v294, %v296
    %v298 = vsel %vm290, %v277, %v280
    %v299 = vsel %vm293, %v286, 920167782
    %v300 = vsel %vm292, %v283, %v299
    %v301 = vsel %vm291, %v298, %v300
    %v302 = vsel %vm290, %v280, %v283
    %v303 = vsel %vm293, %v289, 1326507024
    %v304 = vsel %vm292, %v286, %v303
    %v305 = vsel %vm291, %v302, %v304
    %v306 = vshll.u32 %v266, 8
    %v307 = vand.u32 %v306, 65535
    %v308 = vshrl.u32 %v306, 16
    %v309 = vand.u32 %v305, 65535
    %v310 = vshrl.u32 %v305, 16
    %v311 = vmul.u32 %v307, %v309
    %v312 = vmul.u32 %v307, %v310
    %v313 = vmul.u32 %v308, %v309
    %v314 = vmul.u32 %v308, %v310
    %v315 = vshll.u32 %v312, 16
    %v316 = vshrl.u32 %v312, 16
    %v317 = vshll.u32 %v313, 16
    %v318 = vshrl.u32 %v313, 16
    %vm319 = vc.u32 %v311, %v315
    %v320 = vsel %vm319, 1, 0
    %v321 = vadd.s32 %v311, %v315
    %v322 = vadd.s32 %v314, %v320
    %vm323 = vc.u32 %v321, %v317
    %v324 = vsel %vm323, 1, 0
    %v325 = vadd.s32 %v321, %v317
    %v326 = vadd.s32 %v322, %v324
    %v327 = vadd.s32 %v326, %v316
    %v328 = vadd.s32 %v327, %v318
    %v329 = vand.u32 %v306, 65535
    %v330 = vshrl.u32 %v306, 16
    %v331 = vand.u32 %v301, 65535
    %v332 = vshrl.u32 %v301, 16
    %v333 = vmul.u32 %v329, %v331
    %v334 = vmul.u32 %v329, %v332
    %v335 = vmul.u32 %v330, %v331
    %v336 = vmul.u32 %v330, %v332
    %v337 = vshll.u32 %v334, 16
    %v338 = vshrl.u32 %v334, 16
    %v339 = vshll.u32 %v335, 16
    %v340 = vshrl.u32 %v335, 16
    %vm341 = vc.u32 %v333, %v337
    %v342 = vsel %vm341, 1, 0
    %v343 = vadd.s32 %v333, %v337
    %v344 = vadd.s32 %v336, %v342
    %vm345 = vc.u32 %v343, %v339
    %v346 = vsel %vm345, 1, 0
    %v347 = vadd.s32 %v343, %v339
    %v348 = vadd.s32 %v344, %v346
    %v349 = vadd.s32 %v348, %v338
    %v350 = vadd.s32 %v349, %v340
    %v351 = vmul.u32 %v306, %v297
    %v352 = vadd.s32 %v328, %v347
    %vm353 = vc.u32 %v328, %v347
    %v354 = vadd.s32 %v350, 1
    %v355 = vsel %vm353, %v354, %v350
    %v356 = vadd.s32 %v351, %v355
    %v357 = vadd.s32 %v356, 536870912
    %v358 = vshrl.u32 %v357, 30
    %v359 = vshll.u32 %v358, 30
    %v360 = vsub.s32 %v356, %v359
    %vm361 = vcmp.lt.s32.totalorder %v360, 0
    %v362 = vsub.s32 0, %v360
    %v363 = vsel %vm361, %v362, %v360
    %v364 = vclz %v363
    %v365 = vsub.s32 %v364, 2
    %vm366 = vcmp.gt.s32.totalorder 0, %v365
    %v367 = vsel %vm366, 0, %v365
    %v368 = vsub.s32 32, %v367
    %v369 = vshll.u32 %v360, %v367
    %v370 = vshrl.u32 %v352, %v368
    %v371 = vor.u32 %v369, %v370
    %v372 = vsub.s32 4294967266, %v367
    %v373 = vadd.s32 %v372, 127
    %v374 = vshll.u32 %v373, 23
    %v375 = vor.u32 4788187, %v374
    %v376 = vand.u32 2147483647, %v375
    %v378 = vcvt.s32.f32 %v371
    %v379 = vmul.f32 %v378, %v376
    %v380 = vxor.u32 %v379, 2147483648
    %v381 = vsel %vm260, %v380, %v379
    %v382 = vsub.s32 4, %v358
    %v383 = vsel %vm260, %v382, %v358
    %v384 = vsel %vm259, %v159, %v381
    %v385 = vsel %vm259, 0, %v383
    %v386 = vmul.f32 %v384, %v384
    %v387 = vmul.f32 %v386, -0.001358992
    %v388 = vadd.f32 %v387, 0.041655596
    %v389 = vmul.f32 %v386, %v388
    %v390 = vadd.f32 %v389, -0.4999988
    %v391 = vmul.f32 %v386, %v390
    %v392 = vadd.f32 1.0, %v391
    %v393 = vmul.f32 %v384, %v384
    %v394 = vmul.f32 %v393, -0.00019511016
    %v395 = vadd.f32 %v394, 0.008332121
    %v396 = vmul.f32 %v393, %v395
    %v397 = vadd.f32 %v396, -0.16666654
    %v398 = vmul.f32 %v393, %v397
    %v399 = vadd.f32 %v398, 1.0
    %v400 = vmul.f32 %v399, %v384
    %vm401 = vweird.f32 %v159
    %v402 = vadd.s32 %v385, 3
    %v403 = vand.u32 %v402, 3
    %vm404 = vcmp.lt.s32.totalorder %v403, 2
    %vm405 = vcmp.eq.s32.totalorder %v403, 0
    %v406 = vxor.u32 %v400, 2147483648
    %v407 = vsel %vm405, %v392, %v406
    %vm408 = vcmp.eq.s32.totalorder %v403, 2
    %v409 = vxor.u32 %v392, 2147483648
    %v410 = vsel %vm408, %v409, %v400
    %v411 = vsel %vm404, %v407, %v410
    %v412 = vsel %vm401, nan, %v411
    %v413 = vand.u32 2147483647, %v159
    %vm414 = vcmp.le.f32.partialorder %v413, 0.7853982
    %vm415 = vcmp.lt.s32.totalorder %v159, 0
    %v416 = vand.u32 %v159, 2139095040
    %v417 = vshrl.u32 %v416, 23
    %v418 = vsub.s32 %v417, 127
    %v419 = vand.u32 2147483647, %v159
    %v420 = vand.u32 %v419, 8388607
    %v421 = vor.u32 %v420, 8388608
    %v422 = vsub.s32 0, %v421
    %v423 = vadd.s32 %v418, 1
    %vm424 = vcmp.gt.s32.totalorder %v423, 0
    %v425 = vsel %vm424, %v423, 0
    %v426 = vshrl.u32 %v425, 5
    %v427 = vand.u32 %v425, 31
    %v428 = vsub.s32 32, %v427
    %v429 = vshrl.u32 683565275, %v428
    %v430 = vshll.u32 683565275, %v427
    %v431 = vshrl.u32 2475754826, %v428
    %v432 = vor.u32 %v430, %v431
    %v433 = vshll.u32 2475754826, %v427
    %v434 = vshrl.u32 2131351028, %v428
    %v435 = vor.u32 %v433, %v434
    %v436 = vshll.u32 2131351028, %v427
    %v437 = vshrl.u32 2102212464, %v428
    %v438 = vor.u32 %v436, %v437
    %v439 = vshll.u32 2102212464, %v427
    %v440 = vshrl.u32 920167782, %v428
    %v441 = vor.u32 %v439, %v440
    %v442 = vshll.u32 920167782, %v427
    %v443 = vshrl.u32 1326507024, %v428
    %v444 = vor.u32 %v442, %v443
    %vm445 = vcmp.lt.s32.totalorder %v426, 1
    %vm446 = vcmp.lt.s32.totalorder %v426, 2
    %vm447 = vcmp.lt.s32.totalorder %v426, 3
    %vm448 = vcmp.lt.s32.totalorder %v426, 4
    %v449 = vsel %vm445, %v429, %v432
    %v450 = vsel %vm448, %v438, 2102212464
    %v451 = vsel %vm447, %v435, %v450
    %v452 = vsel %vm446, %v449, %v451
    %v453 = vsel %vm445, %v432, %v435
    %v454 = vsel %vm448, %v441, 920167782
    %v455 = vsel %vm447, %v438, %v454
    %v456 = vsel %vm446, %v453, %v455
    %v457 = vsel %vm445, %v435, %v438
    %v458 = vsel %vm448, %v444, 1326507024
    %v459 = vsel %vm447, %v441, %v458
    %v460 = vsel %vm446, %v457, %v459
    %v461 = vshll.u32 %v421, 8
    %v462 = vand.u32 %v461, 65535
    %v463 = vshrl.u32 %v461, 16
    %v464 = vand.u32 %v460, 65535
    %v465 = vshrl.u32 %v460, 16
    %v466 = vmul.u32 %v462, %v464
    %v467 = vmul.u32 %v462, %v465
    %v468 = vmul.u32 %v463, %v464
    %v469 = vmul.u32 %v463, %v465
    %v470 = vshll.u32 %v467, 16
    %v471 = vshrl.u32 %v467, 16
    %v472 = vshll.u32 %v468, 16
    %v473 = vshrl.u32 %v468, 16
    %vm474 = vc.u32 %v466, %v470
    %v475 = vsel %vm474, 1, 0
    %v476 = vadd.s32 %v466, %v470
    %v477 = vadd.s32 %v469, %v475
    %vm478 = vc.u32 %v476, %v472
    %v479 = vsel %vm478, 1, 0
    %v480 = vadd.s32 %v476, %v472
    %v481 = vadd.s32 %v477, %v479
    %v482 = vadd.s32 %v481, %v471
    %v483 = vadd.s32 %v482, %v473
    %v484 = vand.u32 %v461, 65535
    %v485 = vshrl.u32 %v461, 16
    %v486 = vand.u32 %v456, 65535
    %v487 = vshrl.u32 %v456, 16
    %v488 = vmul.u32 %v484, %v486
    %v489 = vmul.u32 %v484, %v487
    %v490 = vmul.u32 %v485, %v486
    %v491 = vmul.u32 %v485, %v487
    %v492 = vshll.u32 %v489, 16
    %v493 = vshrl.u32 %v489, 16
    %v494 = vshll.u32 %v490, 16
    %v495 = vshrl.u32 %v490, 16
    %vm496 = vc.u32 %v488, %v492
    %v497 = vsel %vm496, 1, 0
    %v498 = vadd.s32 %v488, %v492
    %v499 = vadd.s32 %v491, %v497
    %vm500 = vc.u32 %v498, %v494
    %v501 = vsel %vm500, 1, 0
    %v502 = vadd.s32 %v498, %v494
    %v503 = vadd.s32 %v499, %v501
    %v504 = vadd.s32 %v503, %v493
    %v505 = vadd.s32 %v504, %v495
    %v506 = vmul.u32 %v461, %v452
    %v507 = vadd.s32 %v483, %v502
    %vm508 = vc.u32 %v483, %v502
    %v509 = vadd.s32 %v505, 1
    %v510 = vsel %vm508, %v509, %v505
    %v511 = vadd.s32 %v506, %v510
    %v512 = vadd.s32 %v511, 536870912
    %v513 = vshrl.u32 %v512, 30
    %v514 = vshll.u32 %v513, 30
    %v515 = vsub.s32 %v511, %v514
    %vm516 = vcmp.lt.s32.totalorder %v515, 0
    %v517 = vsub.s32 0, %v515
    %v518 = vsel %vm516, %v517, %v515
    %v519 = vclz %v518
    %v520 = vsub.s32 %v519, 2
    %vm521 = vcmp.gt.s32.totalorder 0, %v520
    %v522 = vsel %vm521, 0, %v520
    %v523 = vsub.s32 32, %v522
    %v524 = vshll.u32 %v515, %v522
    %v525 = vshrl.u32 %v507, %v523
    %v526 = vor.u32 %v524, %v525
    %v527 = vsub.s32 4294967266, %v522
    %v528 = vadd.s32 %v527, 127
    %v529 = vshll.u32 %v528, 23
    %v530 = vor.u32 4788187, %v529
    %v531 = vand.u32 2147483647, %v530
    %v533 = vcvt.s32.f32 %v526
    %v534 = vmul.f32 %v533, %v531
    %v535 = vxor.u32 %v534, 2147483648
    %v536 = vsel %vm415, %v535, %v534
    %v537 = vsub.s32 4, %v513
    %v538 = vsel %vm415, %v537, %v513
    %v539 = vsel %vm414, %v159, %v536
    %v540 = vsel %vm414, 0, %v538
    %v541 = vmul.f32 %v539, %v539
    %v542 = vmul.f32 %v541, -0.001358992
    %v543 = vadd.f32 %v542, 0.041655596
    %v544 = vmul.f32 %v541, %v543
    %v545 = vadd.f32 %v544, -0.4999988
    %v546 = vmul.f32 %v541, %v545
    %v547 = vadd.f32 1.0, %v546
    %v548 = vmul.f32 %v539, %v539
    %v549 = vmul.f32 %v548, -0.00019511016
    %v550 = vadd.f32 %v549, 0.008332121
    %v551 = vmul.f32 %v548, %v550
    %v552 = vadd.f32 %v551, -0.16666654
    %v553 = vmul.f32 %v548, %v552
    %v554 = vadd.f32 %v553, 1.0
    %v555 = vmul.f32 %v554, %v539
    %vm556 = vweird.f32 %v159
    %v557 = vand.u32 %v540, 3
    %vm558 = vcmp.lt.s32.totalorder %v557, 2
    %vm559 = vcmp.eq.s32.totalorder %v557, 0
    %v560 = vxor.u32 %v555, 2147483648
    %v561 = vsel %vm559, %v547, %v560
    %vm562 = vcmp.eq.s32.totalorder %v557, 2
    %v563 = vxor.u32 %v547, 2147483648
    %v564 = vsel %vm562, %v563, %v555
    %v565 = vsel %vm558, %v561, %v564
    %v566 = vsel %vm556, nan, %v565
    %v567 = vmul.f32 %v566, 1e-05
    %v568 = vadd.f32 %v412, %v567
    %v569 = vmul.f32 %v412, 1e-05
    %v570 = vsub.f32 %v566, %v569
    %v571 = vrcp.pop %v570
    %v572 = vmul.f32 %v570, %v571
    %v573 = vsub.f32 1.0, %v572
    %v574 = vmul.f32 %v571, %v573
    %v575 = vadd.f32 %v571, %v574
    %vm576 = vweird.f32 %v570
    %vm577 = vweird.f32 %v571
    %vm578 = vmor %vm576, %vm577
    %v579 = vsel %vm578, %v571, %v575
    %v580 = vand.u32 2147483647, %v570
    %vm581 = vcmp.eq.f32.partialorder %v580, 8.507059e+37
    %v582 = vand.u32 %v570, 2147483648
    %v583 = vor.u32 1.1754944e-38, %v582
    %v584 = vsel %vm581, %v583, %v579
    %v585 = vmul.f32 %v568, %v584
    %v586 = vrcp.pop %v568
    %v587 = vmul.f32 %v568, %v586
    %v588 = vsub.f32 1.0, %v587
    %v589 = vmul.f32 %v586, %v588
    %v590 = vadd.f32 %v586, %v589
    %vm591 = vweird.f32 %v568
    %vm592 = vweird.f32 %v586
    %vm593 = vmor %vm591, %vm592
    %v594 = vsel %vm593, %v586, %v590
    %v595 = vand.u32 2147483647, %v568
    %vm596 = vcmp.eq.f32.partialorder %v595, 8.507059e+37
    %v597 = vand.u32 %v568, 2147483648
    %v598 = vor.u32 1.1754944e-38, %v597
    %v599 = vsel %vm596, %v598, %v594
    %v600 = vmul.f32 %v570, %v599
    %v601 = vrcp.pop %v566
    %v602 = vmul.f32 %v566, %v601
    %v603 = vsub.f32 1.0, %v602
    %v604 = vmul.f32 %v601, %v603
    %v605 = vadd.f32 %v601, %v604
    %vm606 = vweird.f32 %v566
    %vm607 = vweird.f32 %v601
    %vm608 = vmor %vm606, %vm607
    %v609 = vsel %vm608, %v601, %v605
    %v610 = vand.u32 2147483647, %v566
    %vm611 = vcmp.eq.f32.partialorder %v610, 8.507059e+37
    %v612 = vand.u32 %v566, 2147483648
    %v613 = vor.u32 1.1754944e-38, %v612
    %v614 = vsel %vm611, %v613, %v609
    %v615 = vmul.f32 %v412, %v614
    %v616 = vmul.f32 %v585, 3.1415927
    %v617 = vmul.f32 %v616, %v585
    %v618 = vadd.f32 %v617, 1.0
    %v619 = vrsqrt.pop %v618
    %v620 = vmul.f32 %v619, %v618
    %v621 = vmul.f32 %v620, %v619
    %v622 = vmul.f32 0.5, %v621
    %v623 = vsub.f32 1.5, %v622
    %v624 = vmul.f32 %v619, %v623
    %vm625 = vweird.f32 %v618
    %vm626 = vweird.f32 %v619
    %vm627 = vmor %vm625, %vm626
    %v628 = vsel %vm627, %v619, %v624
    %vm629 = vcmp.ne.f32.partialorder %v628, %v628
    %v630 = vsel %vm629, 0.0, %v628
    %v631 = vmul.f32 %v600, %v600
    %v632 = vmul.f32 %v600, -0.63661975
    %v633 = vmul.f32 %v632, %v242
    %v634 = vmul.f32 %v633, 1.442695
    %v635 = vpow.pop %v634
    %vm636 = vcmp.ne.f32.partialorder %v635, %v635
    %v637 = vsel %vm636, 0.0, %v635
    %v638 = vmul.f32 %v632, %v257
    %v639 = vmul.f32 %v638, 1.442695
    %v640 = vpow.pop %v639
    %vm641 = vcmp.ne.f32.partialorder %v640, %v640
    %v642 = vsel %vm641, 0.0, %v640
    %v643 = vmul.f32 %v631, -0.31830987
    %v644 = vmul.f32 %v242, %v242
    %v645 = vmul.f32 %v643, %v644
    %v646 = vmul.f32 %v645, 1.442695
    %v647 = vpow.pop %v646
    %vm648 = vcmp.ne.f32.partialorder %v647, %v647
    %v649 = vsel %vm648, 0.0, %v647
    %v650 = vmul.f32 %v257, %v257
    %v651 = vmul.f32 %v643, %v650
    %v652 = vmul.f32 %v651, 1.442695
    %v653 = vpow.pop %v652
    %vm654 = vcmp.ne.f32.partialorder %v653, %v653
    %v655 = vsel %vm654, 0.0, %v653
    %v656 = vsub.f32 1.0, %v219
    %v657 = vmul.f32 %v656, 0.5
    %vm658 = vcmp.ge.f32.partialorder %v155, %v156
    %v659 = vmul.f32 %v157, 0.31830987
    %v660 = vsub.f32 2.0, %v642
    %v661 = vmul.f32 %v659, %v637
    %v662 = vsub.f32 %v660, %v661
    %v663 = vsub.f32 2.0, %v637
    %v664 = vmul.f32 %v659, %v642
    %v665 = vsub.f32 %v663, %v664
    %v666 = vsel %vm658, %v662, %v665
    %v667 = vrcp.pop %v666
    %v668 = vmul.f32 %v666, %v667
    %v669 = vsub.f32 1.0, %v668
    %v670 = vmul.f32 %v667, %v669
    %v671 = vadd.f32 %v667, %v670
    %vm672 = vweird.f32 %v666
    %vm673 = vweird.f32 %v667
    %vm674 = vmor %vm672, %vm673
    %v675 = vsel %vm674, %v667, %v671
    %v676 = vand.u32 2147483647, %v666
    %vm677 = vcmp.eq.f32.partialorder %v676, 8.507059e+37
    %v678 = vand.u32 %v666, 2147483648
    %v679 = vor.u32 1.1754944e-38, %v678
    %v680 = vsel %vm677, %v679, %v675
    %v681 = vmul.f32 1.0, %v680
    %v682 = vmul.f32 %v219, %v655
    %v683 = vmul.f32 %v657, %v649
    %v684 = vadd.f32 %v682, %v683
    %v685 = vmul.f32 %v657, %v655
    %v686 = vsub.f32 %v649, %v685
    %v687 = vsel %vm658, %v684, %v686
    %v688 = vmul.f32 %v687, %v681
    %v689 = vmul.f32 %v183, %v615
    %v690 = vmul.f32 %v689, %v688
    %v691 = vadd.f32 %v155, %v690
    %v692 = vmul.f32 %v630, %v691
    %vm693 = vcmp.ne.f32.partialorder %v692, %v692
    %v694 = vsel %vm693, %v155, %v692
    %v695 = vsub.f32 %v655, %v683
    %v696 = vmul.f32 %v219, %v649
    %v697 = vadd.f32 %v696, %v685
    %v698 = vsel %vm658, %v695, %v697
    %v699 = vmul.f32 %v698, %v681
    %v700 = vmul.f32 %v198, %v615
    %v701 = vmul.f32 %v700, %v699
    %v702 = vadd.f32 %v156, %v701
    %v703 = vmul.f32 %v630, %v702
    %vm704 = vcmp.ne.f32.partialorder %v703, %v703
    %v705 = vsel %vm704, %v156, %v703
    %706 = vst [vmem:[#allocation23] sm:$0xff] %v694
    %707 = vst [vmem:[#allocation25] sm:$0xff] %v705
    %v708 = vmul.f32 %v183, %v585
    %v709 = vmul.f32 %v708, %v649
    %v710 = vrcp.pop %v663
    %v711 = vmul.f32 %v709, %v710
    %v712 = vadd.f32 %v155, %v711
    %v713 = vmul.f32 %v630, %v712
    %vm714 = vcmp.ne.f32.partialorder %v713, %v713
    %v715 = vsel %vm714, 0.0, %v713
    %v716 = vmul.f32 %v198, %v585
    %v717 = vmul.f32 %v716, %v655
    %v718 = vrcp.pop %v660
    %v719 = vmul.f32 %v717, %v718
    %v720 = vadd.f32 %v156, %v719
    %v721 = vmul.f32 %v630, %v720
    %vm722 = vcmp.ne.f32.partialorder %v721, %v721
    %v723 = vsel %vm722, 0.0, %v721
    %v724 = vmax.f32 %v657, 0.0
    %v725 = vrsqrt.pop %v724
    %v726 = vmul.f32 %v725, %v724
    %v727 = vmul.f32 %v726, %v725
    %v728 = vmul.f32 0.5, %v727
    %v729 = vsub.f32 1.5, %v728
    %v730 = vmul.f32 %v725, %v729
    %v731 = vmul.f32 %v724, %v730
    %vm732 = vcmp.eq.f32.partialorder %v724, inf
    %v733 = vsel %vm732, %v724, %v731
    %vm734 = vcmp.eq.f32.partialorder %v724, 0.0
    %v735 = vand.u32 %v724, 2147483648
    %v736 = vsel %vm734, %v735, %v733
    %v737 = vadd.f32 %v219, 1.0
    %v738 = vmul.f32 %v737, 0.5
    %v739 = vmax.f32 %v738, 0.0
    %v740 = vrsqrt.pop %v739
    %v741 = vmul.f32 %v740, %v739
    %v742 = vmul.f32 %v741, %v740
    %v743 = vmul.f32 0.5, %v742
    %v744 = vsub.f32 1.5, %v743
    %v745 = vmul.f32 %v740, %v744
    %v746 = vmul.f32 %v739, %v745
    %vm747 = vcmp.eq.f32.partialorder %v739, inf
    %v748 = vsel %vm747, %v739, %v746
    %vm749 = vcmp.eq.f32.partialorder %v739, 0.0
    %v750 = vand.u32 %v739, 2147483648
    %v751 = vsel %vm749, %v750, %v748
    %v752 = vmul.f32 %v751, 5e-06
    %v753 = vadd.f32 %v736, %v752
    %v754 = vmul.f32 %v736, 5e-06
    %v755 = vsub.f32 %v751, %v754
    %v756 = vmul.f32 %v753, -2.0
    %v757 = vrcp.pop %v755
    %v758 = vmul.f32 %v755, %v757
    %v759 = vsub.f32 1.0, %v758
    %v760 = vmul.f32 %v757, %v759
    %v761 = vadd.f32 %v757, %v760
    %vm762 = vweird.f32 %v755
    %vm763 = vweird.f32 %v757
    %vm764 = vmor %vm762, %vm763
    %v765 = vsel %vm764, %v757, %v761
    %v766 = vand.u32 2147483647, %v755
    %vm767 = vcmp.eq.f32.partialorder %v766, 8.507059e+37
    %v768 = vand.u32 %v755, 2147483648
    %v769 = vor.u32 1.1754944e-38, %v768
    %v770 = vsel %vm767, %v769, %v765
    %v771 = vmul.f32 %v756, %v770
    %v772 = vmul.f32 %v771, 1.442695
    %v773 = vpow.pop %v772
    %vm774 = vcmp.ne.f32.partialorder %v773, %v773
    %v775 = vsel %vm774, 0.0, %v773
    %v776 = vmul.f32 %v715, %v723
    %v777 = vrcp.pop %v776
    %v778 = vmul.f32 %v705, %v155
    %v779 = vmul.f32 %v778, %v630
    %v780 = vmul.f32 %v779, %v777
    %v781 = vmul.f32 %v155, %v723
    %v782 = vmul.f32 %v156, %v715
    %v783 = vsel %vm658, %v781, %v782
    %v784 = vmul.f32 %v783, %v777
    %v785 = vsub.f32 1.0, %v775
    %v786 = vmul.f32 %v775, %v630
    %v787 = vmul.f32 %v786, %v784
    %v788 = vadd.f32 %v785, %v787
    %v789 = vrcp.pop %v788
    %v790 = vmul.f32 %v780, %v789
    %vm791 = vcmp.ne.f32.partialorder %v790, %v790
    %v792 = vsel %vm791, 0.0, %v790
    %793 = vst [vmem:[#allocation22] sm:$0xff] %v792
    %v794 = vmul.f32 %v163, %v163
    %v795 = vmul.f32 %v164, %v164
    %v796 = vmul.f32 %v165, %v165
    %v797 = vmul.f32 %v163, %v158
    %v798 = vmul.f32 %v164, %v158
    %v799 = vmul.f32 %v165, %v158
    %v800 = vsub.f32 1.0, %v794
    %v801 = vsub.f32 1.0, %v795
    %v802 = vsub.f32 1.0, %v796
    %v803 = vmul.f32 %v166, %v800
    %v804 = vmul.f32 %v167, %v801
    %v805 = vmul.f32 %v168, %v802
    %v806 = vmul.f32 %v797, 2.0
    %v807 = vmul.f32 %v798, 2.0
    %v808 = vmul.f32 %v799, 2.0
    %v809 = vsub.f32 1.0, %v806
    %v810 = vsub.f32 1.0, %v807
    %v811 = vsub.f32 1.0, %v808
    %v812 = vadd.f32 %v809, %v794
    %v813 = vadd.f32 %v810, %v795
    %v814 = vadd.f32 %v811, %v796
    %v815 = vrsqrt.pop %v812
    %v816 = vmul.f32 %v815, %v812
    %v817 = vmul.f32 %v816, %v815
    %v818 = vmul.f32 0.5, %v817
    %v819 = vsub.f32 1.5, %v818
    %v820 = vmul.f32 %v815, %v819
    %v821 = vmul.f32 %v812, %v820
    %vm822 = vcmp.eq.f32.partialorder %v812, inf
    %v823 = vsel %vm822, %v812, %v821
    %vm824 = vcmp.eq.f32.partialorder %v812, 0.0
    %v825 = vand.u32 %v812, 2147483648
    %v826 = vsel %vm824, %v825, %v823
    %v827 = vrsqrt.pop %v813
    %v828 = vmul.f32 %v827, %v813
    %v829 = vmul.f32 %v828, %v827
    %v830 = vmul.f32 0.5, %v829
    %v831 = vsub.f32 1.5, %v830
    %v832 = vmul.f32 %v827, %v831
    %v833 = vmul.f32 %v813, %v832
    %vm834 = vcmp.eq.f32.partialorder %v813, inf
    %v835 = vsel %vm834, %v813, %v833
    %vm836 = vcmp.eq.f32.partialorder %v813, 0.0
    %v837 = vand.u32 %v813, 2147483648
    %v838 = vsel %vm836, %v837, %v835
    %v839 = vrsqrt.pop %v814
    %v840 = vmul.f32 %v839, %v814
    %v841 = vmul.f32 %v840, %v839
    %v842 = vmul.f32 0.5, %v841
    %v843 = vsub.f32 1.5, %v842
    %v844 = vmul.f32 %v839, %v843
    %v845 = vmul.f32 %v814, %v844
    %vm846 = vcmp.eq.f32.partialorder %v814, inf
    %v847 = vsel %vm846, %v814, %v845
    %vm848 = vcmp.eq.f32.partialorder %v814, 0.0
    %v849 = vand.u32 %v814, 2147483648
    %v850 = vsel %vm848, %v849, %v847
    %v851 = vmul.f32 %v812, %v826
    %v852 = vmul.f32 %v813, %v838
    %v853 = vmul.f32 %v814, %v850
    %v854 = vadd.f32 %v851, 1e-06
    %v855 = vadd.f32 %v852, 1e-06
    %v856 = vadd.f32 %v853, 1e-06
    %v857 = vrcp.pop %v854
    %v858 = vrcp.pop %v855
    %v859 = vrcp.pop %v856
    %v860 = vmul.f32 %v803, %v857
    %v861 = vmul.f32 %v804, %v858
    %v862 = vmul.f32 %v805, %v859
    %v863 = vsub.f32 1.0, %v166
    %v864 = vsub.f32 1.0, %v167
    %v865 = vsub.f32 1.0, %v168
    %v866 = vmul.f32 %v863, %v800
    %v867 = vmul.f32 %v864, %v801
    %v868 = vmul.f32 %v865, %v802
    %v869 = vadd.f32 %v806, 1.0
    %v870 = vadd.f32 %v807, 1.0
    %v871 = vadd.f32 %v808, 1.0
    %v872 = vadd.f32 %v869, %v794
    %v873 = vadd.f32 %v870, %v795
    %v874 = vadd.f32 %v871, %v796
    %v875 = vrsqrt.pop %v872
    %v876 = vmul.f32 %v875, %v872
    %v877 = vmul.f32 %v876, %v875
    %v878 = vmul.f32 0.5, %v877
    %v879 = vsub.f32 1.5, %v878
    %v880 = vmul.f32 %v875, %v879
    %v881 = vmul.f32 %v872, %v880
    %vm882 = vcmp.eq.f32.partialorder %v872, inf
    %v883 = vsel %vm882, %v872, %v881
    %vm884 = vcmp.eq.f32.partialorder %v872, 0.0
    %v885 = vand.u32 %v872, 2147483648
    %v886 = vsel %vm884, %v885, %v883
    %v887 = vrsqrt.pop %v873
    %v888 = vmul.f32 %v887, %v873
    %v889 = vmul.f32 %v888, %v887
    %v890 = vmul.f32 0.5, %v889
    %v891 = vsub.f32 1.5, %v890
    %v892 = vmul.f32 %v887, %v891
    %v893 = vmul.f32 %v873, %v892
    %vm894 = vcmp.eq.f32.partialorder %v873, inf
    %v895 = vsel %vm894, %v873, %v893
    %vm896 = vcmp.eq.f32.partialorder %v873, 0.0
    %v897 = vand.u32 %v873, 2147483648
    %v898 = vsel %vm896, %v897, %v895
    %v899 = vrsqrt.pop %v874
    %v900 = vmul.f32 %v899, %v874
    %v901 = vmul.f32 %v900, %v899
    %v902 = vmul.f32 0.5, %v901
    %v903 = vsub.f32 1.5, %v902
    %v904 = vmul.f32 %v899, %v903
    %v905 = vmul.f32 %v874, %v904
    %vm906 = vcmp.eq.f32.partialorder %v874, inf
    %v907 = vsel %vm906, %v874, %v905
    %vm908 = vcmp.eq.f32.partialorder %v874, 0.0
    %v909 = vand.u32 %v874, 2147483648
    %v910 = vsel %vm908, %v909, %v907
    %v911 = vmul.f32 %v872, %v886
    %v912 = vmul.f32 %v873, %v898
    %v913 = vmul.f32 %v874, %v910
    %v914 = vadd.f32 %v911, 1e-06
    %v915 = vadd.f32 %v912, 1e-06
    %v916 = vadd.f32 %v913, 1e-06
    %v917 = vrcp.pop %v914
    %v918 = vrcp.pop %v915
    %v919 = vrcp.pop %v916
    %v920 = vmul.f32 %v866, %v917
    %v921 = vmul.f32 %v867, %v918
    %v922 = vmul.f32 %v868, %v919
    %v923 = vadd.f32 %v860, %v920
    %v924 = vadd.f32 %v861, %v921
    %v925 = vadd.f32 %v862, %v922
    %vm926 = vcmp.ne.f32.partialorder %v923, %v923
    %vm927 = vcmp.ne.f32.partialorder %v924, %v924
    %vm928 = vcmp.ne.f32.partialorder %v925, %v925
    %v929 = vsel %vm926, 0.0, %v923
    %v930 = vsel %vm927, 0.0, %v924
    %v931 = vsel %vm928, 0.0, %v925
    %932 = vst [vmem:[#allocation17] sm:$0xff] %v929
    %933 = vst [vmem:[#allocation17 + $0x8] sm:$0xff] %v930
    %934 = vst [vmem:[#allocation17 + $0x10] sm:$0xff] %v931
    %v935 = vadd.f32 %v694, 1.0
    %v936 = vrcp.pop %v694
    %v937 = vmul.f32 %v694, %v936
    %v938 = vsub.f32 1.0, %v937
    %v939 = vmul.f32 %v936, %v938
    %v940 = vadd.f32 %v936, %v939
    %vm941 = vweird.f32 %v694
    %vm942 = vweird.f32 %v936
    %vm943 = vmor %vm941, %vm942
    %v944 = vsel %vm943, %v936, %v940
    %v945 = vand.u32 2147483647, %v694
    %vm946 = vcmp.eq.f32.partialorder %v945, 8.507059e+37
    %v947 = vand.u32 %v694, 2147483648
    %v948 = vor.u32 1.1754944e-38, %v947
    %v949 = vsel %vm946, %v948, %v944
    %v950 = vmul.f32 %v935, %v949
    %v951 = vand.u32 2147483647, %v950
    %v952 = vlog2.pop %v951
    %v953 = vmul.f32 %v952, 0.6931472
    %v954 = vadd.f32 %v705, 1.0
    %v955 = vrcp.pop %v705
    %v956 = vmul.f32 %v705, %v955
    %v957 = vsub.f32 1.0, %v956
    %v958 = vmul.f32 %v955, %v957
    %v959 = vadd.f32 %v955, %v958
    %vm960 = vweird.f32 %v705
    %vm961 = vweird.f32 %v955
    %vm962 = vmor %vm960, %vm961
    %v963 = vsel %vm962, %v955, %v959
    %v964 = vand.u32 2147483647, %v705
    %vm965 = vcmp.eq.f32.partialorder %v964, 8.507059e+37
    %v966 = vand.u32 %v705, 2147483648
    %v967 = vor.u32 1.1754944e-38, %v966
    %v968 = vsel %vm965, %v967, %v963
    %v969 = vmul.f32 %v954, %v968
    %v970 = vand.u32 2147483647, %v969
    %v971 = vlog2.pop %v970
    %v972 = vmul.f32 %v971, 0.6931472
    %v973 = vsub.f32 1.0, %v160
    %v974 = vsub.f32 1.0, %v161
    %v975 = vsub.f32 1.0, %v162
    %v976 = vrsqrt.pop %v973
    %v977 = vmul.f32 %v976, %v973
    %v978 = vmul.f32 %v977, %v976
    %v979 = vmul.f32 0.5, %v978
    %v980 = vsub.f32 1.5, %v979
    %v981 = vmul.f32 %v976, %v980
    %v982 = vmul.f32 %v973, %v981
    %vm983 = vcmp.eq.f32.partialorder %v973, inf
    %v984 = vsel %vm983, %v973, %v982
    %vm985 = vcmp.eq.f32.partialorder %v973, 0.0
    %v986 = vand.u32 %v973, 2147483648
    %v987 = vsel %vm985, %v986, %v984
    %v988 = vrsqrt.pop %v974
    %v989 = vmul.f32 %v988, %v974
    %v990 = vmul.f32 %v989, %v988
    %v991 = vmul.f32 0.5, %v990
    %v992 = vsub.f32 1.5, %v991
    %v993 = vmul.f32 %v988, %v992
    %v994 = vmul.f32 %v974, %v993
    %vm995 = vcmp.eq.f32.partialorder %v974, inf
    %v996 = vsel %vm995, %v974, %v994
    %vm997 = vcmp.eq.f32.partialorder %v974, 0.0
    %v998 = vand.u32 %v974, 2147483648
    %v999 = vsel %vm997, %v998, %v996
    %v1000 = vrsqrt.pop %v975
    %v1001 = vmul.f32 %v1000, %v975
    %v1002 = vmul.f32 %v1001, %v1000
    %v1003 = vmul.f32 0.5, %v1002
    %v1004 = vsub.f32 1.5, %v1003
    %v1005 = vmul.f32 %v1000, %v1004
    %v1006 = vmul.f32 %v975, %v1005
    %vm1007 = vcmp.eq.f32.partialorder %v975, inf
    %v1008 = vsel %vm1007, %v975, %v1006
    %vm1009 = vcmp.eq.f32.partialorder %v975, 0.0
    %v1010 = vand.u32 %v975, 2147483648
    %v1011 = vsel %vm1009, %v1010, %v1008
    %v1012 = vsub.f32 1.0, %v987
    %v1013 = vsub.f32 1.0, %v999
    %v1014 = vsub.f32 1.0, %v1011
    %v1015 = vadd.f32 %v987, 1.0
    %v1016 = vadd.f32 %v999, 1.0
    %v1017 = vadd.f32 %v1011, 1.0
    %v1018 = vrcp.pop %v1015
    %v1019 = vrcp.pop %v1016
    %v1020 = vrcp.pop %v1017
    %v1021 = vmul.f32 %v1012, %v1018
    %v1022 = vmul.f32 %v1013, %v1019
    %v1023 = vmul.f32 %v1014, %v1020
    %v1024 = vmul.f32 %v160, %v694
    %v1025 = vmul.f32 %v161, %v694
    %v1026 = vmul.f32 %v162, %v694
    %v1027 = vmul.f32 %v1021, 2.0
    %v1028 = vmul.f32 %v1022, 2.0
    %v1029 = vmul.f32 %v1023, 2.0
    %v1030 = vmul.f32 %v1027, %v694
    %v1031 = vmul.f32 %v1028, %v694
    %v1032 = vmul.f32 %v1029, %v694
    %v1033 = vsub.f32 1.0, %v1030
    %v1034 = vsub.f32 1.0, %v1031
    %v1035 = vsub.f32 1.0, %v1032
    %v1036 = vmul.f32 %v1033, 0.5
    %v1037 = vmul.f32 %v1034, 0.5
    %v1038 = vmul.f32 %v1035, 0.5
    %v1039 = vmul.f32 %v1036, %v953
    %v1040 = vmul.f32 %v1037, %v953
    %v1041 = vmul.f32 %v1038, %v953
    %v1042 = vadd.f32 %v1021, %v1039
    %v1043 = vadd.f32 %v1022, %v1040
    %v1044 = vadd.f32 %v1023, %v1041
    %v1045 = vmul.f32 %v1024, %v1042
    %v1046 = vmul.f32 %v1025, %v1043
    %v1047 = vmul.f32 %v1026, %v1044
    %v1048 = vsub.f32 1.0, %v1045
    %v1049 = vsub.f32 1.0, %v1046
    %v1050 = vsub.f32 1.0, %v1047
    %v1051 = vrcp.pop %v1048
    %v1052 = vrcp.pop %v1049
    %v1053 = vrcp.pop %v1050
    %vm1054 = vcmp.ne.f32.partialorder %v1051, %v1051
    %vm1055 = vcmp.ne.f32.partialorder %v1052, %v1052
    %vm1056 = vcmp.ne.f32.partialorder %v1053, %v1053
    %v1057 = vsel %vm1054, 1.0, %v1051
    %v1058 = vsel %vm1055, 1.0, %v1052
    %v1059 = vsel %vm1056, 1.0, %v1053
    %v1060 = vmul.f32 %v160, %v705
    %v1061 = vmul.f32 %v161, %v705
    %v1062 = vmul.f32 %v162, %v705
    %v1063 = vmul.f32 %v1027, %v705
    %v1064 = vmul.f32 %v1028, %v705
    %v1065 = vmul.f32 %v1029, %v705
    %v1066 = vsub.f32 1.0, %v1063
    %v1067 = vsub.f32 1.0, %v1064
    %v1068 = vsub.f32 1.0, %v1065
    %v1069 = vmul.f32 %v1066, 0.5
    %v1070 = vmul.f32 %v1067, 0.5
    %v1071 = vmul.f32 %v1068, 0.5
    %v1072 = vmul.f32 %v1069, %v972
    %v1073 = vmul.f32 %v1070, %v972
    %v1074 = vmul.f32 %v1071, %v972
    %v1075 = vadd.f32 %v1021, %v1072
    %v1076 = vadd.f32 %v1022, %v1073
    %v1077 = vadd.f32 %v1023, %v1074
    %v1078 = vmul.f32 %v1060, %v1075
    %v1079 = vmul.f32 %v1061, %v1076
    %v1080 = vmul.f32 %v1062, %v1077
    %v1081 = vsub.f32 1.0, %v1078
    %v1082 = vsub.f32 1.0, %v1079
    %v1083 = vsub.f32 1.0, %v1080
    %v1084 = vrcp.pop %v1081
    %v1085 = vrcp.pop %v1082
    %v1086 = vrcp.pop %v1083
    %vm1087 = vcmp.ne.f32.partialorder %v1084, %v1084
    %vm1088 = vcmp.ne.f32.partialorder %v1085, %v1085
    %vm1089 = vcmp.ne.f32.partialorder %v1086, %v1086
    %v1090 = vsel %vm1087, 1.0, %v1084
    %v1091 = vsel %vm1088, 1.0, %v1085
    %v1092 = vsel %vm1089, 1.0, %v1086
    %1093 = vst [vmem:[#allocation19] sm:$0xff] %v1057
    %1094 = vst [vmem:[#allocation19 + $0x8] sm:$0xff] %v1058
    %1095 = vst [vmem:[#allocation19 + $0x10] sm:$0xff] %v1059
    %1096 = vst [vmem:[#allocation20] sm:$0xff] %v1090
    %1097 = vst [vmem:[#allocation20 + $0x8] sm:$0xff] %v1091
    %1098 = vst [vmem:[#allocation20 + $0x10] sm:$0xff] %v1092
    %v1099 = vadd.f32 %v694, %v705
    %v1100 = vmul.f32 %v1099, %v155
    %v1101 = vrcp.pop %v1100
    %v1102 = vmul.f32 %v694, %v1101
    %v1103 = vmul.f32 %v160, 0.07957747
    %v1104 = vmul.f32 %v161, 0.07957747
    %v1105 = vmul.f32 %v162, 0.07957747
    %v1106 = vmul.f32 %v1103, %v1102
    %v1107 = vmul.f32 %v1104, %v1102
    %v1108 = vmul.f32 %v1105, %v1102
    %v1109 = vmul.f32 %v1057, %v1090
    %v1110 = vmul.f32 %v1058, %v1091
    %v1111 = vmul.f32 %v1059, %v1092
    %v1112 = vadd.f32 %v929, %v1109
    %v1113 = vadd.f32 %v930, %v1110
    %v1114 = vadd.f32 %v931, %v1111
    %v1115 = vsub.f32 %v1112, 1.0
    %v1116 = vsub.f32 %v1113, 1.0
    %v1117 = vsub.f32 %v1114, 1.0
    %v1118 = vmul.f32 %v1106, %v1115
    %v1119 = vmul.f32 %v1107, %v1116
    %v1120 = vmul.f32 %v1108, %v1117
    %v1121 = vmul.f32 %v1118, %v792
    %v1122 = vmul.f32 %v1119, %v792
    %v1123 = vmul.f32 %v1120, %v792
    %1124 = vst [vmem:[#allocation16] sm:$0xff] %v1121
    %1125 = vst [vmem:[#allocation16 + $0x8] sm:$0xff] %v1122
    %1126 = vst [vmem:[#allocation16 + $0x10] sm:$0xff] %v1123
    // Predicated region
    $region66: #{tpu_custom_call.1} parent=1 // pred_check
      _
    $region67: #{tpu_custom_call.1} parent=1 // pred_check_branch
      %1128 = sbr.rel (0) target = $region69
    $region68: #{tpu_custom_call.1} parent=1 // pred_region
      %1130 = vsyncadd [#allocation4], 0
      %s1131 = sshll.u32 [#allocation16], 4
      %s1132 = int_to_ptr.vmem [resolvable:$true] %s1131
      %s1133 = sshll.u32 %s8, 4
      %s1134 = int_to_ptr.hbm [resolvable:$true] %s1133
      %1139 = dma.vmem_to_hbm [thread:$0]  %s1132, 384, %s1134, [#allocation4], 128, 128, 8
    $region69: #{tpu_custom_call.1} parent=1 // pred_fallthru
      _
    // Predicated region
    $region70: #{tpu_custom_call.1} parent=1 // pred_check
      _
    $region71: #{tpu_custom_call.1} parent=1 // pred_check_branch
      %1141 = sbr.rel (0) target = $region73
    $region72: #{tpu_custom_call.1} parent=1 // pred_region
      %1143 = vsyncadd [#allocation18], 0
      %s1144 = sshll.u32 [#allocation17], 4
      %s1145 = int_to_ptr.vmem [resolvable:$true] %s1144
      %s1146 = sshll.u32 %s9, 4
      %s1147 = int_to_ptr.hbm [resolvable:$true] %s1146
      %1152 = dma.vmem_to_hbm [thread:$0]  %s1145, 384, %s1147, [#allocation18], 128, 128, 8
    $region73: #{tpu_custom_call.1} parent=1 // pred_fallthru
      _
    // Predicated region
    $region74: #{tpu_custom_call.1} parent=1 // pred_check
      _
    $region75: #{tpu_custom_call.1} parent=1 // pred_check_branch
      %1154 = sbr.rel (0) target = $region77
    $region76: #{tpu_custom_call.1} parent=1 // pred_region
      %1156 = vsyncadd [#allocation18], 0
      %s1157 = sshll.u32 [#allocation19], 4
      %s1158 = int_to_ptr.vmem [resolvable:$true] %s1157
      %s1159 = sshll.u32 %s10, 4
      %s1160 = int_to_ptr.hbm [resolvable:$true] %s1159
      %1165 = dma.vmem_to_hbm [thread:$0]  %s1158, 384, %s1160, [#allocation18], 128, 128, 8
    $region77: #{tpu_custom_call.1} parent=1 // pred_fallthru
      _
    // Predicated region
    $region78: #{tpu_custom_call.1} parent=1 // pred_check
      _
    $region79: #{tpu_custom_call.1} parent=1 // pred_check_branch
      %1167 = sbr.rel (0) target = $region81
    $region80: #{tpu_custom_call.1} parent=1 // pred_region
      %1169 = vsyncadd [#allocation21], 0
      %s1170 = sshll.u32 [#allocation20], 4
      %s1171 = int_to_ptr.vmem [resolvable:$true] %s1170
      %s1172 = sshll.u32 %s11, 4
      %s1173 = int_to_ptr.hbm [resolvable:$true] %s1172
      %1178 = dma.vmem_to_hbm [thread:$0]  %s1171, 384, %s1173, [#allocation21], 128, 128, 8
    $region81: #{tpu_custom_call.1} parent=1 // pred_fallthru
      _
    // Predicated region
    $region82: #{tpu_custom_call.1} parent=1 // pred_check
      _
    $region83: #{tpu_custom_call.1} parent=1 // pred_check_branch
      %1180 = sbr.rel (0) target = $region85
    $region84: #{tpu_custom_call.1} parent=1 // pred_region
      %1182 = vsyncadd [#allocation21], 0
      %s1184 = sshll.u32 [#allocation22], 4
      %s1185 = int_to_ptr.vmem [resolvable:$true] %s1184
      %s1186 = sshll.u32 %s12, 4
      %s1187 = int_to_ptr.hbm [resolvable:$true] %s1186
      %1189 = dma.vmem_to_hbm [thread:$0]  %s1185, 128, %s1187, [#allocation21]
    $region85: #{tpu_custom_call.1} parent=1 // pred_fallthru
      _
    // Predicated region
    $region86: #{tpu_custom_call.1} parent=1 // pred_check
      _
    $region87: #{tpu_custom_call.1} parent=1 // pred_check_branch
      %1191 = sbr.rel (0) target = $region89
    $region88: #{tpu_custom_call.1} parent=1 // pred_region
      %1193 = vsyncadd [#allocation24], 0
      %s1195 = sshll.u32 [#allocation23], 4
      %s1196 = int_to_ptr.vmem [resolvable:$true] %s1195
      %s1197 = sshll.u32 %s13, 4
      %s1198 = int_to_ptr.hbm [resolvable:$true] %s1197
      %1200 = dma.vmem_to_hbm [thread:$0]  %s1196, 128, %s1198, [#allocation24]
    $region89: #{tpu_custom_call.1} parent=1 // pred_fallthru
      _
    // Predicated region
    $region90: #{tpu_custom_call.1} parent=1 // pred_check
      _
    $region91: #{tpu_custom_call.1} parent=1 // pred_check_branch
      %1202 = sbr.rel (0) target = $region93
    $region92: #{tpu_custom_call.1} parent=1 // pred_region
      %1204 = vsyncadd [#allocation24], 0
      %s1206 = sshll.u32 [#allocation25], 4
      %s1207 = int_to_ptr.vmem [resolvable:$true] %s1206
      %s1208 = sshll.u32 %s14, 4
      %s1209 = int_to_ptr.hbm [resolvable:$true] %s1208
      %1211 = dma.vmem_to_hbm [thread:$0]  %s1207, 128, %s1209, [#allocation24]
    $region93: #{tpu_custom_call.1} parent=1 // pred_fallthru
      _
    // Predicated region
    $region94: #{tpu_custom_call.1} parent=1 // pred_check
      _
    $region95: #{tpu_custom_call.1} parent=1 // pred_check_branch
      %1213 = sbr.rel (0) target = $region97
    $region96: #{tpu_custom_call.1} parent=1 // pred_region
      %1215 = dma.done [#allocation4], 384
    $region97: #{tpu_custom_call.1} parent=1 // pred_fallthru
      _
    // Predicated region
    $region98: #{tpu_custom_call.1} parent=1 // pred_check
      _
    $region99: #{tpu_custom_call.1} parent=1 // pred_check_branch
      %1217 = sbr.rel (0) target = $region101
    $region100: #{tpu_custom_call.1} parent=1 // pred_region
      %1219 = dma.done [#allocation18], 384
    $region101: #{tpu_custom_call.1} parent=1 // pred_fallthru
      _
    // Predicated region
    $region102: #{tpu_custom_call.1} parent=1 // pred_check
      _
    $region103: #{tpu_custom_call.1} parent=1 // pred_check_branch
      %1221 = sbr.rel (0) target = $region105
    $region104: #{tpu_custom_call.1} parent=1 // pred_region
      %1223 = dma.done [#allocation18], 384
    $region105: #{tpu_custom_call.1} parent=1 // pred_fallthru
      _
    // Predicated region
    $region106: #{tpu_custom_call.1} parent=1 // pred_check
      _
    $region107: #{tpu_custom_call.1} parent=1 // pred_check_branch
      %1225 = sbr.rel (0) target = $region109
    $region108: #{tpu_custom_call.1} parent=1 // pred_region
      %1227 = dma.done [#allocation21], 384
    $region109: #{tpu_custom_call.1} parent=1 // pred_fallthru
      _
    // Predicated region
    $region110: #{tpu_custom_call.1} parent=1 // pred_check
      _
    $region111: #{tpu_custom_call.1} parent=1 // pred_check_branch
      %1229 = sbr.rel (0) target = $region113
    $region112: #{tpu_custom_call.1} parent=1 // pred_region
      %1231 = dma.done [#allocation21], 128
    $region113: #{tpu_custom_call.1} parent=1 // pred_fallthru
      _
    // Predicated region
    $region114: #{tpu_custom_call.1} parent=1 // pred_check
      _
    $region115: #{tpu_custom_call.1} parent=1 // pred_check_branch
      %1233 = sbr.rel (0) target = $region117
    $region116: #{tpu_custom_call.1} parent=1 // pred_region
      %1235 = dma.done [#allocation24], 128
    $region117: #{tpu_custom_call.1} parent=1 // pred_fallthru
      _
    // Predicated region
    $region118: #{tpu_custom_call.1} parent=1 // pred_check
      _
    $region119: #{tpu_custom_call.1} parent=1 // pred_check_branch
      %1237 = sbr.rel (0) target = $region121
    $region120: #{tpu_custom_call.1} parent=1 // pred_region
      %1239 = dma.done [#allocation24], 128
    $region121: #{tpu_custom_call.1} parent=1 // pred_fallthru
      _
    %1240 = vsyncpa [#allocation3], 1
    %1241 = vsyncpa [#allocation6], 1
    %1242 = vsyncpa [#allocation9], 1
    %1243 = vsyncpa [#allocation12], 1
    %1244 = vsyncpa [#allocation15], 1
    %1245 = vsyncpa [#allocation4], 1
    %1246 = vsyncpa [#allocation18], 1
    %1247 = vsyncpa [#allocation21], 1
    %1248 = vsyncpa [#allocation24], 1

</llo_original>
